<compile_context>
chip_gen: v5e
topology: v5e:2x2
jax: 0.10.0
libtpu: 0.0.40
codegen_flags: <defaults>
</compile_context>

<pallas_src>
import functools

import jax
import jax.numpy as jnp
from jax.experimental import pallas as pl
from jax.experimental.pallas import tpu as pltpu


def _light_group_attn_kernel(q_ref, m_ref, wkT_ref, ln_ref, out_ref, attn_ref,
                             *, num_heads, head_dim, eps):
    """One grid step == `block_b` batch elements. Everything lives in VMEM."""
    Bb, Nq, C = q_ref.shape
    Nk = m_ref.shape[1]
    H, D = num_heads, head_dim

    q_in = q_ref[...].astype(jnp.float32)          # (Bb, Nq, C) raw query (residual)
    m_in = m_ref[...].astype(jnp.float32)          # (Bb, Nk, C)

    ln = ln_ref[...].astype(jnp.float32)           # (4, C) packed LayerNorm params
    gq, bq = ln[0], ln[1]                          # query LN affine, pre-scaled by D**-0.5
    gk, bk = ln[2], ln[3]                          # key/value LN affine

    def layer_norm(x, gamma, beta):
        mu = jnp.mean(x, axis=-1, keepdims=True)
        xc = x - mu
        var = jnp.mean(xc * xc, axis=-1, keepdims=True)
        return xc * jax.lax.rsqrt(var + eps) * gamma + beta

    # LayerNorm is per-token: collapse (batch, tokens) (leading-dim reshape only)
    # so LN and the k-projection run once as dense 2-D ops over the whole block.
    qn = layer_norm(q_in.reshape(Bb * Nq, C), gq, bq)      # (Bb*Nq, C) scale folded in
    kn = layer_norm(m_in.reshape(Bb * Nk, C), gk, bk)      # (Bb*Nk, C) also the values

    # k projection: Linear(C, C, bias=False); wkT is pre-transposed (in, out) so
    # there is no per-step transpose.  Cast follows wkT dtype (bf16 opt-in).
    kp = jnp.dot(kn.astype(wkT_ref.dtype), wkT_ref[...],
                 preferred_element_type=jnp.float32)        # (Bb*Nk, C) one MXU matmul

    # Back to (block, tokens, C) -- leading-dim reshapes only, no lane relayout.
    qn3 = qn.reshape(Bb, Nq, C)
    kp3 = kp.reshape(Bb, Nk, C)
    kn3 = kn.reshape(Bb, Nk, C)

    # Short static head loop (H is small): each iteration works on the WHOLE
    # block batch with single-batch-dim einsums, so there is no per-batch
    # Python unroll and no to_heads stacks.  Kept as a loop (rather than a
    # 2-batch-dim einsum + 4-D transpose) for robust Mosaic lowering.
    p_heads = []
    o_heads = []
    for h in range(H):
        sl = slice(h * D, (h + 1) * D)
        qh = qn3[:, :, sl]                                   # (Bb, Nq, D)
        kh = kp3[:, :, sl]                                   # (Bb, Nk, D)
        vh = kn3[:, :, sl]                                   # (Bb, Nk, D)

        s = jnp.einsum('bqd,bkd->bqk', qh, kh,
                       preferred_element_type=jnp.float32)   # scale already folded in
        s = s - jnp.max(s, axis=-1, keepdims=True)
        e = jnp.exp(s)
        p = e * pl.reciprocal(jnp.sum(e, axis=-1, keepdims=True), approx=False)
        p_heads.append(p)
        o_heads.append(jnp.einsum('bqk,bkd->bqd', p, vh,
                                  preferred_element_type=jnp.float32))

    # Exactly two full-block stores per grid step (no per-batch/per-head stores).
    attn_ref[...] = jnp.stack(p_heads, axis=1).astype(attn_ref.dtype)  # (Bb, H, Nq, Nk)
    o = jnp.concatenate(o_heads, axis=-1)                               # (Bb, Nq, C)
    out_ref[...] = (q_in + o).astype(out_ref.dtype)                     # residual on raw query


def _tpu_cores_and_budget():
    """Returns (TensorCores per chip, scoped-VMEM budget used for block sizing)."""
    kind = ""
    try:
        kind = jax.devices()[0].device_kind.lower()
    except Exception:
        pass
    two_core = ("v7" in kind) or ("tpu7" in kind)
    # Leave headroom below physical VMEM: 64 MiB on v7x, 128 MiB on v5e/v6e.
    budget = (24 << 20) if two_core else (48 << 20)
    return (2 if two_core else 1), budget


def _vmem_bytes_estimate(block_b, Nq, Nk, C, H, in_isz, out_isz, attn_isz, w_isz):
    """Conservative per-grid-step footprint: double-buffered pipelined I/O blocks
    + resident weight/params + in-kernel f32 temporaries."""
    io = 2 * block_b * ((Nq * C + Nk * C) * in_isz
                        + Nq * C * out_isz
                        + H * Nq * Nk * attn_isz)
    f32 = 4
    tmps = block_b * f32 * (4 * Nq * C            # q_in, qn, o, out staging
                            + 3 * Nk * C          # m_in, kn, kp
                            + 3 * H * Nq * Nk)    # s/e/p + stacked probs
    fixed = 2 * (C * C * w_isz + 4 * C * 4)       # weight (dbl-buffered) + LN params
    return io + tmps + fixed


def _choose_block_b(B, Nq, Nk, C, H, *, num_cores, in_itemsize, out_itemsize,
                    attn_itemsize, w_itemsize, vmem_budget_bytes):
    """Largest divisor of B whose estimated footprint fits the budget.

    Single-TensorCore chips (v5e/v6e): allow block_b == B (grid of 1) -- extra
    grid steps are pure ~0.35 us overhead on a serial grid.  v7x (2 TCs):
    prefer a block_b whose grid length is a multiple of the core count so both
    TensorCores get equal work."""
    divisors = [d for d in range(1, B + 1) if B % d == 0]

    def fits(d):
        return _vmem_bytes_estimate(d, Nq, Nk, C, H, in_itemsize, out_itemsize,
                                    attn_itemsize, w_itemsize) <= vmem_budget_bytes

    feasible = [d for d in divisors if fits(d)]
    if not feasible:
        # TODO(synk): add an Nk grid axis with online-softmax accumulation for
        # memory-token counts where even block_b == 1 overflows VMEM (v7x, 64 MiB).
        feasible = [1]
    if num_cores > 1 and B >= num_cores:
        balanced = [d for d in feasible if (B // d) % num_cores == 0]
        if balanced:
            feasible = balanced
    return max(feasible)


def light_group_attn_block(query, memory, wk, gamma_q, beta_q, gamma_k, beta_k,
                           *, num_heads, eps=1e-5, block_b=None,
                           attn_dtype=jnp.float32, wk_dtype=jnp.float32,
                           vmem_budget_bytes=None):
    """query: (B, Nq, C)  memory: (B, Nk, C)  wk: (C, C) torch-layout (out, in)."""
    B, Nq, C = query.shape
    _, Nk, _ = memory.shape
    assert C % num_heads == 0
    head_dim = C // num_heads

    in_isz = jnp.dtype(query.dtype).itemsize
    out_isz = in_isz
    attn_isz = jnp.dtype(attn_dtype).itemsize
    w_isz = jnp.dtype(wk_dtype).itemsize

    num_cores, default_budget = _tpu_cores_and_budget()
    if vmem_budget_bytes is None:
        vmem_budget_bytes = default_budget

    if block_b is None:
        block_b = _choose_block_b(B, Nq, Nk, C, num_heads, num_cores=num_cores,
                                  in_itemsize=in_isz, out_itemsize=out_isz,
                                  attn_itemsize=attn_isz, w_itemsize=w_isz,
                                  vmem_budget_bytes=vmem_budget_bytes)
    # TODO(synk): pad-or-remainder path for batch sizes where block_b must be 1.
    assert B % block_b == 0
    grid_b = B // block_b

    est = _vmem_bytes_estimate(block_b, Nq, Nk, C, num_heads,
                               in_isz, out_isz, attn_isz, w_isz)
    vmem_limit = int(min(48 << 20, max(32 << 20, 2 * est)))

    scale = head_dim ** -0.5
    # Fold the attention scale into the *query* LayerNorm affine params: qn only
    # feeds the scores (the residual uses the raw query), so this is exact and
    # removes the per-score multiply from the kernel.
    ln_params = jnp.stack([
        jnp.asarray(gamma_q, jnp.float32) * scale,
        jnp.asarray(beta_q, jnp.float32) * scale,
        jnp.asarray(gamma_k, jnp.float32),
        jnp.asarray(beta_k, jnp.float32),
    ], axis=0)                                            # (4, C): single param block

    # Pre-transpose the Linear weight once (host/XLA side); wk_dtype=jnp.bfloat16
    # is an opt-in for the v6e/v7x MXU if the caller accepts looser numerics.
    wk_t = jnp.asarray(wk).T.astype(wk_dtype)             # (C_in, C_out)

    kernel = functools.partial(_light_group_attn_kernel, num_heads=num_heads,
                               head_dim=head_dim, eps=eps)

    out, attn = pl.pallas_call(
        kernel,
        out_shape=(
            jax.ShapeDtypeStruct((B, Nq, C), query.dtype),
            jax.ShapeDtypeStruct((B, num_heads, Nq, Nk), attn_dtype),
        ),
        grid_spec=pltpu.PrefetchScalarGridSpec(
            num_scalar_prefetch=0,
            grid=(grid_b,),
            in_specs=[
                pl.BlockSpec((block_b, Nq, C), lambda i: (i, 0, 0)),
                pl.BlockSpec((block_b, Nk, C), lambda i: (i, 0, 0)),
                pl.BlockSpec((C, C), lambda i: (0, 0)),
                pl.BlockSpec((4, C), lambda i: (0, 0)),
            ],
            out_specs=[
                pl.BlockSpec((block_b, Nq, C), lambda i: (i, 0, 0)),
                pl.BlockSpec((block_b, num_heads, Nq, Nk),
                             lambda i: (i, 0, 0, 0)),
            ],
        ),
        compiler_params=pltpu.CompilerParams(
            dimension_semantics=("parallel",),
            vmem_limit_bytes=vmem_limit),
    )(query, memory, wk_t, ln_params)
    return out, attn


def _reference(query, memory, wk, gq, bq, gk, bk, num_heads, eps=1e-5):
    """Pure-JAX reference mirroring the PyTorch forward."""
    def ln(x, g, b):
        mu = x.mean(-1, keepdims=True)
        var = ((x - mu) ** 2).mean(-1, keepdims=True)
        return (x - mu) / jnp.sqrt(var + eps) * g + b

    B, Nq, C = query.shape
    Nk = memory.shape[1]
    D = C // num_heads
    qn = ln(query, gq, bq)
    kn = ln(memory, gk, bk)
    kp = kn @ wk.T
    qh = qn.reshape(B, Nq, num_heads, D).transpose(0, 2, 1, 3)
    kh = kp.reshape(B, Nk, num_heads, D).transpose(0, 2, 1, 3)
    vh = kn.reshape(B, Nk, num_heads, D).transpose(0, 2, 1, 3)
    s = jnp.einsum('bhqd,bhkd->bhqk', qh, kh) * (D ** -0.5)
    p = jax.nn.softmax(s, axis=-1)
    o = jnp.einsum('bhqk,bhkd->bhqd', p, vh).transpose(0, 2, 1, 3).reshape(B, Nq, C)
    return query + o, p


if __name__ == "__main__":
    # Small GPViT-like shapes.  C and Nk are multiples of 128 so the natural
    # (..., C) / (..., Nk) output trailing dims are already full-lane unmasked
    # stores (lane-dense out_spec); for sub-128 configs flatten trailing output
    # dims on the wrapper side instead.
    B, Nq, Nk, C, H = 2, 8, 128, 128, 4

    key = jax.random.PRNGKey(0)
    k_q, k_m, k_w = jax.random.split(key, 3)

    query = jax.random.normal(k_q, (B, Nq, C), dtype=jnp.float32)
    memory = jax.random.normal(k_m, (B, Nk, C), dtype=jnp.float32)

    # k_proj Linear weight: trunc_normal(std=0.02, a=-0.02, b=0.02), no bias
    wk = 0.02 * jax.random.truncated_normal(k_w, -1.0, 1.0, (C, C), dtype=jnp.float32)

    # LayerNorm params at PyTorch defaults
    gamma_q = jnp.ones((C,), jnp.float32)
    beta_q = jnp.zeros((C,), jnp.float32)
    gamma_k = jnp.ones((C,), jnp.float32)
    beta_k = jnp.zeros((C,), jnp.float32)

    out, attn = light_group_attn_block(query, memory, wk, gamma_q, beta_q,
                                       gamma_k, beta_k, num_heads=H)
    jax.block_until_ready((out, attn))

    ref_out, ref_attn = _reference(query, memory, wk, gamma_q, beta_q,
                                   gamma_k, beta_k, H)
    assert out.shape == (B, Nq, C) and attn.shape == (B, H, Nq, Nk)
    assert jnp.allclose(out, ref_out, atol=1e-4, rtol=1e-4)
    assert jnp.allclose(attn, ref_attn, atol=1e-5, rtol=1e-5)

    print("KERNEL_OK")
</pallas_src>

<mosaic_0001>
module attributes {stable_mosaic.version = 11 : i64} {
  func.func @_light_group_attn_kernel(%arg0: i32, %arg1: memref<2x8x128xf32, #tpu.memory_space<vmem>>, %arg2: memref<2x128x128xf32, #tpu.memory_space<vmem>>, %arg3: memref<128x128xf32, #tpu.memory_space<vmem>>, %arg4: memref<4x128xf32, #tpu.memory_space<vmem>>, %arg5: memref<2x8x128xf32, #tpu.memory_space<vmem>>, %arg6: memref<2x4x8x128xf32, #tpu.memory_space<vmem>>) attributes {dimension_semantics = [#tpu.dimension_semantics<parallel>], iteration_bounds = array<i64: 1>, scalar_prefetch = 0 : i64, scratch_operands = 0 : i64, tpu.core_type = #tpu.core_type<tc>, window_params = [{transform_indices = @transform_0, window_bounds = array<i64: 2, 8, 128>}, {transform_indices = @transform_1, window_bounds = array<i64: 2, 128, 128>}, {pipeline_mode = #tpu.pipeline_mode<synchronous>, transform_indices = @transform_2, window_bounds = array<i64: 128, 128>}, {pipeline_mode = #tpu.pipeline_mode<synchronous>, transform_indices = @transform_3, window_bounds = array<i64: 4, 128>}, {transform_indices = @transform_4, window_bounds = array<i64: 2, 8, 128>}, {transform_indices = @transform_5, window_bounds = array<i64: 2, 4, 8, 128>}]} {
    %c0 = arith.constant 0 : index
    %c0_0 = arith.constant 0 : index
    %c0_1 = arith.constant 0 : index
    %0 = vector.load %arg1[%c0, %c0_0, %c0_1] : memref<2x8x128xf32, #tpu.memory_space<vmem>>, vector<2x8x128xf32>
    %c0_2 = arith.constant 0 : index
    %c0_3 = arith.constant 0 : index
    %c0_4 = arith.constant 0 : index
    %1 = vector.load %arg2[%c0_2, %c0_3, %c0_4] : memref<2x128x128xf32, #tpu.memory_space<vmem>>, vector<2x128x128xf32>
    %c0_5 = arith.constant 0 : index
    %c0_6 = arith.constant 0 : index
    %2 = vector.load %arg4[%c0_5, %c0_6] : memref<4x128xf32, #tpu.memory_space<vmem>>, vector<4x128xf32>
    %3 = vector.extract_strided_slice %2 {offsets = [0, 0], sizes = [1, 128], strides = [1, 1]} : vector<4x128xf32> to vector<1x128xf32>
    %4 = vector.shape_cast %3 : vector<1x128xf32> to vector<128xf32>
    %5 = vector.extract_strided_slice %2 {offsets = [1, 0], sizes = [1, 128], strides = [1, 1]} : vector<4x128xf32> to vector<1x128xf32>
    %6 = vector.shape_cast %5 : vector<1x128xf32> to vector<128xf32>
    %7 = vector.extract_strided_slice %2 {offsets = [2, 0], sizes = [1, 128], strides = [1, 1]} : vector<4x128xf32> to vector<1x128xf32>
    %8 = vector.shape_cast %7 : vector<1x128xf32> to vector<128xf32>
    %9 = vector.extract_strided_slice %2 {offsets = [3, 0], sizes = [1, 128], strides = [1, 1]} : vector<4x128xf32> to vector<1x128xf32>
    %10 = vector.shape_cast %9 : vector<1x128xf32> to vector<128xf32>
    %11 = vector.shape_cast %0 : vector<2x8x128xf32> to vector<16x128xf32>
    %cst = arith.constant dense<0.000000e+00> : vector<16xf32>
    %12 = vector.multi_reduction <add>, %11, %cst [1] : vector<16x128xf32> to vector<16xf32>
    %13 = vector.shape_cast %12 : vector<16xf32> to vector<16x1xf32>
    %cst_7 = arith.constant 1.280000e+02 : f32
    %14 = vector.broadcast %cst_7 : f32 to vector<16x1xf32>
    %15 = arith.divf %13, %14 : vector<16x1xf32>
    %16 = vector.broadcast %15 : vector<16x1xf32> to vector<16x128xf32>
    %17 = arith.subf %11, %16 : vector<16x128xf32>
    %18 = arith.mulf %17, %17 : vector<16x128xf32>
    %cst_8 = arith.constant dense<0.000000e+00> : vector<16xf32>
    %19 = vector.multi_reduction <add>, %18, %cst_8 [1] : vector<16x128xf32> to vector<16xf32>
    %20 = vector.shape_cast %19 : vector<16xf32> to vector<16x1xf32>
    %cst_9 = arith.constant 1.280000e+02 : f32
    %21 = vector.broadcast %cst_9 : f32 to vector<16x1xf32>
    %22 = arith.divf %20, %21 : vector<16x1xf32>
    %cst_10 = arith.constant 9.99999974E-6 : f32
    %23 = vector.broadcast %cst_10 : f32 to vector<16x1xf32>
    %24 = arith.addf %22, %23 : vector<16x1xf32>
    %25 = math.rsqrt %24 : vector<16x1xf32>
    %26 = vector.broadcast %25 : vector<16x1xf32> to vector<16x128xf32>
    %27 = arith.mulf %17, %26 : vector<16x128xf32>
    %28 = vector.shape_cast %4 : vector<128xf32> to vector<1x128xf32>
    %29 = vector.broadcast %28 : vector<1x128xf32> to vector<16x128xf32>
    %30 = arith.mulf %27, %29 : vector<16x128xf32>
    %31 = vector.shape_cast %6 : vector<128xf32> to vector<1x128xf32>
    %32 = vector.broadcast %31 : vector<1x128xf32> to vector<16x128xf32>
    %33 = arith.addf %30, %32 : vector<16x128xf32>
    %34 = vector.shape_cast %1 : vector<2x128x128xf32> to vector<256x128xf32>
    %cst_11 = arith.constant dense<0.000000e+00> : vector<256xf32>
    %35 = vector.multi_reduction <add>, %34, %cst_11 [1] : vector<256x128xf32> to vector<256xf32>
    %36 = vector.shape_cast %35 : vector<256xf32> to vector<256x1xf32>
    %cst_12 = arith.constant 1.280000e+02 : f32
    %37 = vector.broadcast %cst_12 : f32 to vector<256x1xf32>
    %38 = arith.divf %36, %37 : vector<256x1xf32>
    %39 = vector.broadcast %38 : vector<256x1xf32> to vector<256x128xf32>
    %40 = arith.subf %34, %39 : vector<256x128xf32>
    %41 = arith.mulf %40, %40 : vector<256x128xf32>
    %cst_13 = arith.constant dense<0.000000e+00> : vector<256xf32>
    %42 = vector.multi_reduction <add>, %41, %cst_13 [1] : vector<256x128xf32> to vector<256xf32>
    %43 = vector.shape_cast %42 : vector<256xf32> to vector<256x1xf32>
    %cst_14 = arith.constant 1.280000e+02 : f32
    %44 = vector.broadcast %cst_14 : f32 to vector<256x1xf32>
    %45 = arith.divf %43, %44 : vector<256x1xf32>
    %cst_15 = arith.constant 9.99999974E-6 : f32
    %46 = vector.broadcast %cst_15 : f32 to vector<256x1xf32>
    %47 = arith.addf %45, %46 : vector<256x1xf32>
    %48 = math.rsqrt %47 : vector<256x1xf32>
    %49 = vector.broadcast %48 : vector<256x1xf32> to vector<256x128xf32>
    %50 = arith.mulf %40, %49 : vector<256x128xf32>
    %51 = vector.shape_cast %8 : vector<128xf32> to vector<1x128xf32>
    %52 = vector.broadcast %51 : vector<1x128xf32> to vector<256x128xf32>
    %53 = arith.mulf %50, %52 : vector<256x128xf32>
    %54 = vector.shape_cast %10 : vector<128xf32> to vector<1x128xf32>
    %55 = vector.broadcast %54 : vector<1x128xf32> to vector<256x128xf32>
    %56 = arith.addf %53, %55 : vector<256x128xf32>
    %c0_16 = arith.constant 0 : index
    %c0_17 = arith.constant 0 : index
    %57 = vector.load %arg3[%c0_16, %c0_17] : memref<128x128xf32, #tpu.memory_space<vmem>>, vector<128x128xf32>
    %cst_18 = arith.constant dense<0.000000e+00> : vector<256x128xf32>
    %58 = tpu.matmul %56, %57, %cst_18 {dimension_numbers = #tpu.dot_dimension_numbers<[1], [0], [0], [1], [0, 0, 1, 1], [], []>} : vector<256x128xf32>, vector<128x128xf32>, vector<256x128xf32> -> vector<256x128xf32>
    %59 = vector.shape_cast %33 : vector<16x128xf32> to vector<2x8x128xf32>
    %60 = vector.shape_cast %58 : vector<256x128xf32> to vector<2x128x128xf32>
    %61 = vector.shape_cast %56 : vector<256x128xf32> to vector<2x128x128xf32>
    %62 = vector.extract_strided_slice %59 {offsets = [0, 0, 0], sizes = [2, 8, 32], strides = [1, 1, 1]} : vector<2x8x128xf32> to vector<2x8x32xf32>
    %63 = vector.extract_strided_slice %60 {offsets = [0, 0, 0], sizes = [2, 128, 32], strides = [1, 1, 1]} : vector<2x128x128xf32> to vector<2x128x32xf32>
    %64 = vector.extract_strided_slice %61 {offsets = [0, 0, 0], sizes = [2, 128, 32], strides = [1, 1, 1]} : vector<2x128x128xf32> to vector<2x128x32xf32>
    "tpu.trace_start"() <{level = 10 : i32, message = "bqd,bkd->bqk"}> : () -> ()
    %cst_19 = arith.constant dense<0.000000e+00> : vector<2x8x128xf32>
    %65 = tpu.matmul %62, %63, %cst_19 {dimension_numbers = #tpu.dot_dimension_numbers<[2], [2], [1], [1], [0, 0, 0, 1, 1, 1], [0], [0]>} : vector<2x8x32xf32>, vector<2x128x32xf32>, vector<2x8x128xf32> -> vector<2x8x128xf32>
    "tpu.trace_stop"() : () -> ()
    %cst_20 = arith.constant dense<0xFF800000> : vector<2x8xf32>
    %66 = vector.multi_reduction <maximumf>, %65, %cst_20 [2] : vector<2x8x128xf32> to vector<2x8xf32>
    %67 = vector.shape_cast %66 : vector<2x8xf32> to vector<2x8x1xf32>
    %68 = vector.broadcast %67 : vector<2x8x1xf32> to vector<2x8x128xf32>
    %69 = arith.subf %65, %68 : vector<2x8x128xf32>
    %70 = math.exp %69 : vector<2x8x128xf32>
    %cst_21 = arith.constant dense<0.000000e+00> : vector<2x8xf32>
    %71 = vector.multi_reduction <add>, %70, %cst_21 [2] : vector<2x8x128xf32> to vector<2x8xf32>
    %72 = vector.shape_cast %71 : vector<2x8xf32> to vector<2x8x1xf32>
    %73 = tpu.reciprocal %72 : vector<2x8x1xf32> -> vector<2x8x1xf32>
    %74 = vector.broadcast %73 : vector<2x8x1xf32> to vector<2x8x128xf32>
    %75 = arith.mulf %70, %74 : vector<2x8x128xf32>
    "tpu.trace_start"() <{level = 10 : i32, message = "bqk,bkd->bqd"}> : () -> ()
    %cst_22 = arith.constant dense<0.000000e+00> : vector<2x8x32xf32>
    %76 = tpu.matmul %75, %64, %cst_22 {dimension_numbers = #tpu.dot_dimension_numbers<[2], [1], [1], [2], [0, 0, 0, 1, 1, 2], [0], [0]>} : vector<2x8x128xf32>, vector<2x128x32xf32>, vector<2x8x32xf32> -> vector<2x8x32xf32>
    "tpu.trace_stop"() : () -> ()
    %77 = vector.extract_strided_slice %59 {offsets = [0, 0, 32], sizes = [2, 8, 32], strides = [1, 1, 1]} : vector<2x8x128xf32> to vector<2x8x32xf32>
    %78 = vector.extract_strided_slice %60 {offsets = [0, 0, 32], sizes = [2, 128, 32], strides = [1, 1, 1]} : vector<2x128x128xf32> to vector<2x128x32xf32>
    %79 = vector.extract_strided_slice %61 {offsets = [0, 0, 32], sizes = [2, 128, 32], strides = [1, 1, 1]} : vector<2x128x128xf32> to vector<2x128x32xf32>
    "tpu.trace_start"() <{level = 10 : i32, message = "bqd,bkd->bqk"}> : () -> ()
    %cst_23 = arith.constant dense<0.000000e+00> : vector<2x8x128xf32>
    %80 = tpu.matmul %77, %78, %cst_23 {dimension_numbers = #tpu.dot_dimension_numbers<[2], [2], [1], [1], [0, 0, 0, 1, 1, 1], [0], [0]>} : vector<2x8x32xf32>, vector<2x128x32xf32>, vector<2x8x128xf32> -> vector<2x8x128xf32>
    "tpu.trace_stop"() : () -> ()
    %cst_24 = arith.constant dense<0xFF800000> : vector<2x8xf32>
    %81 = vector.multi_reduction <maximumf>, %80, %cst_24 [2] : vector<2x8x128xf32> to vector<2x8xf32>
    %82 = vector.shape_cast %81 : vector<2x8xf32> to vector<2x8x1xf32>
    %83 = vector.broadcast %82 : vector<2x8x1xf32> to vector<2x8x128xf32>
    %84 = arith.subf %80, %83 : vector<2x8x128xf32>
    %85 = math.exp %84 : vector<2x8x128xf32>
    %cst_25 = arith.constant dense<0.000000e+00> : vector<2x8xf32>
    %86 = vector.multi_reduction <add>, %85, %cst_25 [2] : vector<2x8x128xf32> to vector<2x8xf32>
    %87 = vector.shape_cast %86 : vector<2x8xf32> to vector<2x8x1xf32>
    %88 = tpu.reciprocal %87 : vector<2x8x1xf32> -> vector<2x8x1xf32>
    %89 = vector.broadcast %88 : vector<2x8x1xf32> to vector<2x8x128xf32>
    %90 = arith.mulf %85, %89 : vector<2x8x128xf32>
    "tpu.trace_start"() <{level = 10 : i32, message = "bqk,bkd->bqd"}> : () -> ()
    %cst_26 = arith.constant dense<0.000000e+00> : vector<2x8x32xf32>
    %91 = tpu.matmul %90, %79, %cst_26 {dimension_numbers = #tpu.dot_dimension_numbers<[2], [1], [1], [2], [0, 0, 0, 1, 1, 2], [0], [0]>} : vector<2x8x128xf32>, vector<2x128x32xf32>, vector<2x8x32xf32> -> vector<2x8x32xf32>
    "tpu.trace_stop"() : () -> ()
    %92 = vector.extract_strided_slice %59 {offsets = [0, 0, 64], sizes = [2, 8, 32], strides = [1, 1, 1]} : vector<2x8x128xf32> to vector<2x8x32xf32>
    %93 = vector.extract_strided_slice %60 {offsets = [0, 0, 64], sizes = [2, 128, 32], strides = [1, 1, 1]} : vector<2x128x128xf32> to vector<2x128x32xf32>
    %94 = vector.extract_strided_slice %61 {offsets = [0, 0, 64], sizes = [2, 128, 32], strides = [1, 1, 1]} : vector<2x128x128xf32> to vector<2x128x32xf32>
    "tpu.trace_start"() <{level = 10 : i32, message = "bqd,bkd->bqk"}> : () -> ()
    %cst_27 = arith.constant dense<0.000000e+00> : vector<2x8x128xf32>
    %95 = tpu.matmul %92, %93, %cst_27 {dimension_numbers = #tpu.dot_dimension_numbers<[2], [2], [1], [1], [0, 0, 0, 1, 1, 1], [0], [0]>} : vector<2x8x32xf32>, vector<2x128x32xf32>, vector<2x8x128xf32> -> vector<2x8x128xf32>
    "tpu.trace_stop"() : () -> ()
    %cst_28 = arith.constant dense<0xFF800000> : vector<2x8xf32>
    %96 = vector.multi_reduction <maximumf>, %95, %cst_28 [2] : vector<2x8x128xf32> to vector<2x8xf32>
    %97 = vector.shape_cast %96 : vector<2x8xf32> to vector<2x8x1xf32>
    %98 = vector.broadcast %97 : vector<2x8x1xf32> to vector<2x8x128xf32>
    %99 = arith.subf %95, %98 : vector<2x8x128xf32>
    %100 = math.exp %99 : vector<2x8x128xf32>
    %cst_29 = arith.constant dense<0.000000e+00> : vector<2x8xf32>
    %101 = vector.multi_reduction <add>, %100, %cst_29 [2] : vector<2x8x128xf32> to vector<2x8xf32>
    %102 = vector.shape_cast %101 : vector<2x8xf32> to vector<2x8x1xf32>
    %103 = tpu.reciprocal %102 : vector<2x8x1xf32> -> vector<2x8x1xf32>
    %104 = vector.broadcast %103 : vector<2x8x1xf32> to vector<2x8x128xf32>
    %105 = arith.mulf %100, %104 : vector<2x8x128xf32>
    "tpu.trace_start"() <{level = 10 : i32, message = "bqk,bkd->bqd"}> : () -> ()
    %cst_30 = arith.constant dense<0.000000e+00> : vector<2x8x32xf32>
    %106 = tpu.matmul %105, %94, %cst_30 {dimension_numbers = #tpu.dot_dimension_numbers<[2], [1], [1], [2], [0, 0, 0, 1, 1, 2], [0], [0]>} : vector<2x8x128xf32>, vector<2x128x32xf32>, vector<2x8x32xf32> -> vector<2x8x32xf32>
    "tpu.trace_stop"() : () -> ()
    %107 = vector.extract_strided_slice %59 {offsets = [0, 0, 96], sizes = [2, 8, 32], strides = [1, 1, 1]} : vector<2x8x128xf32> to vector<2x8x32xf32>
    %108 = vector.extract_strided_slice %60 {offsets = [0, 0, 96], sizes = [2, 128, 32], strides = [1, 1, 1]} : vector<2x128x128xf32> to vector<2x128x32xf32>
    %109 = vector.extract_strided_slice %61 {offsets = [0, 0, 96], sizes = [2, 128, 32], strides = [1, 1, 1]} : vector<2x128x128xf32> to vector<2x128x32xf32>
    "tpu.trace_start"() <{level = 10 : i32, message = "bqd,bkd->bqk"}> : () -> ()
    %cst_31 = arith.constant dense<0.000000e+00> : vector<2x8x128xf32>
    %110 = tpu.matmul %107, %108, %cst_31 {dimension_numbers = #tpu.dot_dimension_numbers<[2], [2], [1], [1], [0, 0, 0, 1, 1, 1], [0], [0]>} : vector<2x8x32xf32>, vector<2x128x32xf32>, vector<2x8x128xf32> -> vector<2x8x128xf32>
    "tpu.trace_stop"() : () -> ()
    %cst_32 = arith.constant dense<0xFF800000> : vector<2x8xf32>
    %111 = vector.multi_reduction <maximumf>, %110, %cst_32 [2] : vector<2x8x128xf32> to vector<2x8xf32>
    %112 = vector.shape_cast %111 : vector<2x8xf32> to vector<2x8x1xf32>
    %113 = vector.broadcast %112 : vector<2x8x1xf32> to vector<2x8x128xf32>
    %114 = arith.subf %110, %113 : vector<2x8x128xf32>
    %115 = math.exp %114 : vector<2x8x128xf32>
    %cst_33 = arith.constant dense<0.000000e+00> : vector<2x8xf32>
    %116 = vector.multi_reduction <add>, %115, %cst_33 [2] : vector<2x8x128xf32> to vector<2x8xf32>
    %117 = vector.shape_cast %116 : vector<2x8xf32> to vector<2x8x1xf32>
    %118 = tpu.reciprocal %117 : vector<2x8x1xf32> -> vector<2x8x1xf32>
    %119 = vector.broadcast %118 : vector<2x8x1xf32> to vector<2x8x128xf32>
    %120 = arith.mulf %115, %119 : vector<2x8x128xf32>
    "tpu.trace_start"() <{level = 10 : i32, message = "bqk,bkd->bqd"}> : () -> ()
    %cst_34 = arith.constant dense<0.000000e+00> : vector<2x8x32xf32>
    %121 = tpu.matmul %120, %109, %cst_34 {dimension_numbers = #tpu.dot_dimension_numbers<[2], [1], [1], [2], [0, 0, 0, 1, 1, 2], [0], [0]>} : vector<2x8x128xf32>, vector<2x128x32xf32>, vector<2x8x32xf32> -> vector<2x8x32xf32>
    "tpu.trace_stop"() : () -> ()
    %122 = vector.shape_cast %75 : vector<2x8x128xf32> to vector<2x1x8x128xf32>
    %123 = vector.shape_cast %90 : vector<2x8x128xf32> to vector<2x1x8x128xf32>
    %124 = vector.shape_cast %105 : vector<2x8x128xf32> to vector<2x1x8x128xf32>
    %125 = vector.shape_cast %120 : vector<2x8x128xf32> to vector<2x1x8x128xf32>
    %126 = tpu.concatenate %122, %123, %124, %125 in 1 : vector<2x1x8x128xf32>, vector<2x1x8x128xf32>, vector<2x1x8x128xf32>, vector<2x1x8x128xf32> -> vector<2x4x8x128xf32>
    %c0_35 = arith.constant 0 : index
    %c0_36 = arith.constant 0 : index
    %c0_37 = arith.constant 0 : index
    %c0_38 = arith.constant 0 : index
    %127 = vector.load %arg6[%c0_35, %c0_36, %c0_37, %c0_38] : memref<2x4x8x128xf32, #tpu.memory_space<vmem>>, vector<2x4x8x128xf32>
    tpu.vector_store %arg6[%c0_35, %c0_36, %c0_37, %c0_38], %126 {strides = array<i32>} : memref<2x4x8x128xf32, #tpu.memory_space<vmem>>, vector<2x4x8x128xf32>,
    %128 = tpu.concatenate %76, %91, %106, %121 in 2 : vector<2x8x32xf32>, vector<2x8x32xf32>, vector<2x8x32xf32>, vector<2x8x32xf32> -> vector<2x8x128xf32>
    %129 = arith.addf %0, %128 : vector<2x8x128xf32>
    %c0_39 = arith.constant 0 : index
    %c0_40 = arith.constant 0 : index
    %c0_41 = arith.constant 0 : index
    %130 = vector.load %arg5[%c0_39, %c0_40, %c0_41] : memref<2x8x128xf32, #tpu.memory_space<vmem>>, vector<2x8x128xf32>
    tpu.vector_store %arg5[%c0_39, %c0_40, %c0_41], %129 {strides = array<i32>} : memref<2x8x128xf32, #tpu.memory_space<vmem>>, vector<2x8x128xf32>,
    return
  }
  func.func @transform_0(%arg0: i32) -> (i32, i32, i32) {
    %c0_i32 = arith.constant 0 : i32
    %c0_i32_0 = arith.constant 0 : i32
    %c0_i32_1 = arith.constant 0 : i32
    return %arg0, %c0_i32, %c0_i32_0 : i32, i32, i32
  }
  func.func @transform_1(%arg0: i32) -> (i32, i32, i32) {
    %c0_i32 = arith.constant 0 : i32
    %c0_i32_0 = arith.constant 0 : i32
    %c0_i32_1 = arith.constant 0 : i32
    return %arg0, %c0_i32, %c0_i32_0 : i32, i32, i32
  }
  func.func @transform_2(%arg0: i32) -> (i32, i32) {
    %c0_i32 = arith.constant 0 : i32
    %c0_i32_0 = arith.constant 0 : i32
    %c0_i32_1 = arith.constant 0 : i32
    return %c0_i32, %c0_i32_0 : i32, i32
  }
  func.func @transform_3(%arg0: i32) -> (i32, i32) {
    %c0_i32 = arith.constant 0 : i32
    %c0_i32_0 = arith.constant 0 : i32
    %c0_i32_1 = arith.constant 0 : i32
    return %c0_i32, %c0_i32_0 : i32, i32
  }
  func.func @transform_4(%arg0: i32) -> (i32, i32, i32) {
    %c0_i32 = arith.constant 0 : i32
    %c0_i32_0 = arith.constant 0 : i32
    %c0_i32_1 = arith.constant 0 : i32
    return %arg0, %c0_i32, %c0_i32_0 : i32, i32, i32
  }
  func.func @transform_5(%arg0: i32) -> (i32, i32, i32, i32) {
    %c0_i32 = arith.constant 0 : i32
    %c0_i32_0 = arith.constant 0 : i32
    %c0_i32_1 = arith.constant 0 : i32
    %c0_i32_2 = arith.constant 0 : i32
    return %arg0, %c0_i32, %c0_i32_0, %c0_i32_1 : i32, i32, i32, i32
  }
}

</mosaic_0001>

<llo_original>
// kernel: tpu_custom_call.1
$region0: #{tpu_custom_call.1}
  #allocation0 [shape = 'u32[]', space=smem, size = 0x4, offset = 0x4, fixed_abs, tag = 'smem constant byte address 0x4 - core index']
  #allocation1 [shape = 'u32[72,128]{1,0:T(1,128)}', space=vmem, size = 0x9000, scoped, tag = 'internal scratch']
  %s0 = inlined_call_operand.hbm [shape: f32[2,8,128], index: 0, kind: input, shape index: {}]
  %s1 = inlined_call_operand.hbm [shape: f32[2,128,128], index: 1, kind: input, shape index: {}]
  %s2 = inlined_call_operand.hbm [shape: f32[128,128], index: 2, kind: input, shape index: {}]
  %s3 = inlined_call_operand.hbm [shape: f32[4,128], index: 3, kind: input, shape index: {}]
  %s4 = inlined_call_operand.hbm [shape: f32[2,8,128], index: 4, kind: output, shape index: {0}]
  %s5 = inlined_call_operand.hbm [shape: f32[2,4,8,128], index: 5, kind: output, shape index: {1}]
  %6 = xla_tuple %s4, %s5
  %s7 = sld [smem:[#allocation0]]
  $region50: #{tpu_custom_call.1} parent=0
    _
  %s9 = ssub.s32 1, %s7
  %s10 = scalar_select 0, %s9, %s7
  $region1: #{tpu_custom_call.1} parent=0
    #allocation2 [shape = 'u8[8192]{0}', space=vmem, size = 0x2000, scoped, tag = 'input window, operand 0, single buffered']
    #allocation3 [shape = 's32[1]{0}', space=sflag, size = 0x4, scoped, tag = 'scoped memory for tpu_custom_call.1']
    #allocation4 [shape = 's32[1]{0}', space=sflag, size = 0x4, scoped, tag = 'scoped memory for tpu_custom_call.1']
    #allocation5 [shape = 'u8[131072]{0}', space=vmem, size = 0x20000, scoped, tag = 'input window, operand 1, single buffered']
    #allocation6 [shape = 's32[1]{0}', space=sflag, size = 0x4, scoped, tag = 'scoped memory for tpu_custom_call.1']
    #allocation7 [shape = 'u8[65536]{0}', space=vmem, size = 0x10000, scoped, tag = 'input window, operand 2, single buffered']
    #allocation8 [shape = 'u8[2048]{0}', space=vmem, size = 0x800, scoped, tag = 'input window, operand 3, single buffered']
    #allocation9 [shape = 's32[1]{0}', space=sflag, size = 0x4, scoped, tag = 'scoped memory for tpu_custom_call.1']
    #allocation10 [shape = 'u8[8192]{0}', space=vmem, size = 0x2000, scoped, tag = 'output window, operand 0, single buffered']
    #allocation11 [shape = 'u8[32768]{0}', space=vmem, size = 0x8000, scoped, tag = 'output window, operand 1, single buffered']
    #allocation12 [shape = 's32[1]{0}', space=sflag, size = 0x4, scoped, tag = 'scoped memory for tpu_custom_call.1']
    %11 = vsyncpa [#allocation3], 0
    %12 = vsyncpa [#allocation6], 0
    %13 = vsyncpa [#allocation9], 0
    %14 = vsyncpa [#allocation4], 0
    %15 = vsyncpa [#allocation12], 0
    // Predicated region
    $region2: #{tpu_custom_call.1} parent=1 // pred_check
      _
    $region3: #{tpu_custom_call.1} parent=1 // pred_check_branch
      %17 = sbr.rel (0) target = $region5
    $region4: #{tpu_custom_call.1} parent=1 // pred_region
      %19 = vsyncadd [#allocation3], 0
      %s20 = sshll.u32 %s0, 4
      %s21 = int_to_ptr.hbm [resolvable:$true] %s20
      %s22 = sshll.u32 [#allocation2], 4
      %s23 = int_to_ptr.vmem [resolvable:$true] %s22
      %28 = dma.hbm_to_vmem [thread:$0]  %s21, 256, %s23, [#allocation3], 128, 128, 8
    $region5: #{tpu_custom_call.1} parent=1 // pred_fallthru
      _
    // Predicated region
    $region6: #{tpu_custom_call.1} parent=1 // pred_check
      _
    $region7: #{tpu_custom_call.1} parent=1 // pred_check_branch
      %30 = sbr.rel (0) target = $region9
    $region8: #{tpu_custom_call.1} parent=1 // pred_region
      %32 = vsyncadd [#allocation6], 0
      %s33 = sshll.u32 %s1, 4
      %s34 = int_to_ptr.hbm [resolvable:$true] %s33
      %s35 = sshll.u32 [#allocation5], 4
      %s36 = int_to_ptr.vmem [resolvable:$true] %s35
      %41 = dma.hbm_to_vmem [thread:$0]  %s34, 4096, %s36, [#allocation6], 128, 128, 8
    $region9: #{tpu_custom_call.1} parent=1 // pred_fallthru
      _
    // Predicated region
    $region10: #{tpu_custom_call.1} parent=1 // pred_check
      _
    $region11: #{tpu_custom_call.1} parent=1 // pred_check_branch
      %43 = sbr.rel (0) target = $region13
    $region12: #{tpu_custom_call.1} parent=1 // pred_region
      %45 = vsyncadd [#allocation6], 0
      %s46 = sshll.u32 %s2, 4
      %s47 = int_to_ptr.hbm [resolvable:$true] %s46
      %s48 = sshll.u32 [#allocation7], 4
      %s49 = int_to_ptr.vmem [resolvable:$true] %s48
      %54 = dma.hbm_to_vmem [thread:$0]  %s47, 2048, %s49, [#allocation6], 128, 128, 8
    $region13: #{tpu_custom_call.1} parent=1 // pred_fallthru
      _
    // Predicated region
    $region14: #{tpu_custom_call.1} parent=1 // pred_check
      _
    $region15: #{tpu_custom_call.1} parent=1 // pred_check_branch
      %56 = sbr.rel (0) target = $region17
    $region16: #{tpu_custom_call.1} parent=1 // pred_region
      %58 = vsyncadd [#allocation9], 0
      %s60 = sshll.u32 %s3, 4
      %s61 = int_to_ptr.hbm [resolvable:$true] %s60
      %s62 = sshll.u32 [#allocation8], 4
      %s63 = int_to_ptr.vmem [resolvable:$true] %s62
      %65 = dma.hbm_to_vmem [thread:$0]  %s61, 64, %s63, [#allocation9]
    $region17: #{tpu_custom_call.1} parent=1 // pred_fallthru
      _
    // Predicated region
    $region18: #{tpu_custom_call.1} parent=1 // pred_check
      _
    $region19: #{tpu_custom_call.1} parent=1 // pred_check_branch
      %67 = sbr.rel (0) target = $region21
    $region20: #{tpu_custom_call.1} parent=1 // pred_region
      %69 = dma.done [#allocation3], 256
    $region21: #{tpu_custom_call.1} parent=1 // pred_fallthru
      _
    // Predicated region
    $region22: #{tpu_custom_call.1} parent=1 // pred_check
      _
    $region23: #{tpu_custom_call.1} parent=1 // pred_check_branch
      %71 = sbr.rel (0) target = $region25
    $region24: #{tpu_custom_call.1} parent=1 // pred_region
      %73 = dma.done [#allocation6], 4096
    $region25: #{tpu_custom_call.1} parent=1 // pred_fallthru
      _
    // Predicated region
    $region26: #{tpu_custom_call.1} parent=1 // pred_check
      _
    $region27: #{tpu_custom_call.1} parent=1 // pred_check_branch
      %75 = sbr.rel (0) target = $region29
    $region28: #{tpu_custom_call.1} parent=1 // pred_region
      %77 = dma.done [#allocation6], 2048
    $region29: #{tpu_custom_call.1} parent=1 // pred_fallthru
      _
    // Predicated region
    $region30: #{tpu_custom_call.1} parent=1 // pred_check
      _
    $region31: #{tpu_custom_call.1} parent=1 // pred_check_branch
      %79 = sbr.rel (0) target = $region33
    $region32: #{tpu_custom_call.1} parent=1 // pred_region
      %81 = dma.done [#allocation9], 64
    $region33: #{tpu_custom_call.1} parent=1 // pred_fallthru
      _
    %v82 = vld [vmem:[#allocation2] sm:$0xff]
    %v83 = vld [vmem:[#allocation2 + $0x8] sm:$0xff]
    %v84 = vld [vmem:[#allocation5] sm:$0xff]
    %v85 = vld [vmem:[#allocation5 + $0x8] sm:$0xff]
    %v86 = vld [vmem:[#allocation5 + $0x10] sm:$0xff]
    %v87 = vld [vmem:[#allocation5 + $0x18] sm:$0xff]
    %v88 = vld [vmem:[#allocation5 + $0x20] sm:$0xff]
    %v89 = vld [vmem:[#allocation5 + $0x28] sm:$0xff]
    %v90 = vld [vmem:[#allocation5 + $0x30] sm:$0xff]
    %v91 = vld [vmem:[#allocation5 + $0x38] sm:$0xff]
    %v92 = vld [vmem:[#allocation5 + $0x40] sm:$0xff]
    %v93 = vld [vmem:[#allocation5 + $0x48] sm:$0xff]
    %v94 = vld [vmem:[#allocation5 + $0x50] sm:$0xff]
    %v95 = vld [vmem:[#allocation5 + $0x58] sm:$0xff]
    %v96 = vld [vmem:[#allocation5 + $0x60] sm:$0xff]
    %v97 = vld [vmem:[#allocation5 + $0x68] sm:$0xff]
    %v98 = vld [vmem:[#allocation5 + $0x70] sm:$0xff]
    %v99 = vld [vmem:[#allocation5 + $0x78] sm:$0xff]
    %v100 = vld [vmem:[#allocation5 + $0x80] sm:$0xff]
    %v101 = vld [vmem:[#allocation5 + $0x88] sm:$0xff]
    %v102 = vld [vmem:[#allocation5 + $0x90] sm:$0xff]
    %v103 = vld [vmem:[#allocation5 + $0x98] sm:$0xff]
    %v104 = vld [vmem:[#allocation5 + $0xa0] sm:$0xff]
    %v105 = vld [vmem:[#allocation5 + $0xa8] sm:$0xff]
    %v106 = vld [vmem:[#allocation5 + $0xb0] sm:$0xff]
    %v107 = vld [vmem:[#allocation5 + $0xb8] sm:$0xff]
    %v108 = vld [vmem:[#allocation5 + $0xc0] sm:$0xff]
    %v109 = vld [vmem:[#allocation5 + $0xc8] sm:$0xff]
    %v110 = vld [vmem:[#allocation5 + $0xd0] sm:$0xff]
    %v111 = vld [vmem:[#allocation5 + $0xd8] sm:$0xff]
    %v112 = vld [vmem:[#allocation5 + $0xe0] sm:$0xff]
    %v113 = vld [vmem:[#allocation5 + $0xe8] sm:$0xff]
    %v114 = vld [vmem:[#allocation5 + $0xf0] sm:$0xff]
    %v115 = vld [vmem:[#allocation5 + $0xf8] sm:$0xff]
    %v116 = vld [vmem:[#allocation8] sm:$0xf]
    %117 = vadd.xlane.f32.xlu0 %v82
    %v118 = vpop.xlane.xlu0 %117
    %119 = vadd.xlane.f32.xlu0 %v83
    %v120 = vpop.xlane.xlu0 %119
    %v121 = vrcp.pop 128.0
    %v122 = vmul.f32 128.0, %v121
    %v123 = vsub.f32 1.0, %v122
    %v124 = vmul.f32 %v121, %v123
    %v125 = vadd.f32 %v121, %v124
    %vm126 = vweird.f32 %v121
    %v127 = vsel %vm126, %v121, %v125
    %v128 = vmul.f32 %v118, %v127
    %v129 = vmul.f32 %v120, %v127
    %v130 = vsub.f32 %v82, %v128
    %v131 = vsub.f32 %v83, %v129
    %v132 = vmul.f32 %v130, %v130
    %v133 = vmul.f32 %v131, %v131
    %134 = vadd.xlane.f32.xlu0 %v132
    %v135 = vpop.xlane.xlu0 %134
    %136 = vadd.xlane.f32.xlu0 %v133
    %v137 = vpop.xlane.xlu0 %136
    %v138 = vmul.f32 %v135, %v127
    %v139 = vmul.f32 %v137, %v127
    %v140 = vadd.f32 %v138, 1e-05
    %v141 = vadd.f32 %v139, 1e-05
    %v142 = vrsqrt.pop %v140
    %v143 = vmul.f32 %v142, %v140
    %v144 = vmul.f32 %v143, %v142
    %v145 = vmul.f32 0.5, %v144
    %v146 = vsub.f32 1.5, %v145
    %v147 = vmul.f32 %v142, %v146
    %vm148 = vweird.f32 %v140
    %vm149 = vweird.f32 %v142
    %vm150 = vmor %vm148, %vm149
    %v151 = vsel %vm150, %v142, %v147
    %v152 = vrsqrt.pop %v141
    %v153 = vmul.f32 %v152, %v141
    %v154 = vmul.f32 %v153, %v152
    %v155 = vmul.f32 0.5, %v154
    %v156 = vsub.f32 1.5, %v155
    %v157 = vmul.f32 %v152, %v156
    %vm158 = vweird.f32 %v141
    %vm159 = vweird.f32 %v152
    %vm160 = vmor %vm158, %vm159
    %v161 = vsel %vm160, %v152, %v157
    %v162 = vmul.f32 %v130, %v151
    %v163 = vmul.f32 %v131, %v161
    %v164 = vperm.slane %v116, 0
    %v165 = vmul.f32 %v162, %v164
    %v166 = vmul.f32 %v163, %v164
    %v167 = vperm.slane %v116, 1
    %v168 = vadd.f32 %v165, %v167
    %v169 = vadd.f32 %v166, %v167
    %170 = vadd.xlane.f32.xlu0 %v84
    %v171 = vpop.xlane.xlu0 %170
    %172 = vadd.xlane.f32.xlu0 %v85
    %v173 = vpop.xlane.xlu0 %172
    %174 = vadd.xlane.f32.xlu0 %v86
    %v175 = vpop.xlane.xlu0 %174
    %176 = vadd.xlane.f32.xlu0 %v87
    %v177 = vpop.xlane.xlu0 %176
    %178 = vadd.xlane.f32.xlu0 %v88
    %v179 = vpop.xlane.xlu0 %178
    %180 = vadd.xlane.f32.xlu0 %v89
    %v181 = vpop.xlane.xlu0 %180
    %182 = vadd.xlane.f32.xlu0 %v90
    %v183 = vpop.xlane.xlu0 %182
    %184 = vadd.xlane.f32.xlu0 %v91
    %v185 = vpop.xlane.xlu0 %184
    %186 = vadd.xlane.f32.xlu0 %v92
    %v187 = vpop.xlane.xlu0 %186
    %188 = vadd.xlane.f32.xlu0 %v93
    %v189 = vpop.xlane.xlu0 %188
    %190 = vadd.xlane.f32.xlu0 %v94
    %v191 = vpop.xlane.xlu0 %190
    %192 = vadd.xlane.f32.xlu0 %v95
    %v193 = vpop.xlane.xlu0 %192
    %194 = vadd.xlane.f32.xlu0 %v96
    %v195 = vpop.xlane.xlu0 %194
    %196 = vadd.xlane.f32.xlu0 %v97
    %v197 = vpop.xlane.xlu0 %196
    %198 = vadd.xlane.f32.xlu0 %v98
    %v199 = vpop.xlane.xlu0 %198
    %200 = vadd.xlane.f32.xlu0 %v99
    %v201 = vpop.xlane.xlu0 %200
    %202 = vadd.xlane.f32.xlu0 %v100
    %v203 = vpop.xlane.xlu0 %202
    %204 = vadd.xlane.f32.xlu0 %v101
    %v205 = vpop.xlane.xlu0 %204
    %206 = vadd.xlane.f32.xlu0 %v102
    %v207 = vpop.xlane.xlu0 %206
    %208 = vadd.xlane.f32.xlu0 %v103
    %v209 = vpop.xlane.xlu0 %208
    %210 = vadd.xlane.f32.xlu0 %v104
    %v211 = vpop.xlane.xlu0 %210
    %212 = vadd.xlane.f32.xlu0 %v105
    %v213 = vpop.xlane.xlu0 %212
    %214 = vadd.xlane.f32.xlu0 %v106
    %v215 = vpop.xlane.xlu0 %214
    %216 = vadd.xlane.f32.xlu0 %v107
    %v217 = vpop.xlane.xlu0 %216
    %218 = vadd.xlane.f32.xlu0 %v108
    %v219 = vpop.xlane.xlu0 %218
    %220 = vadd.xlane.f32.xlu0 %v109
    %v221 = vpop.xlane.xlu0 %220
    %222 = vadd.xlane.f32.xlu0 %v110
    %v223 = vpop.xlane.xlu0 %222
    %224 = vadd.xlane.f32.xlu0 %v111
    %v225 = vpop.xlane.xlu0 %224
    %226 = vadd.xlane.f32.xlu0 %v112
    %v227 = vpop.xlane.xlu0 %226
    %228 = vadd.xlane.f32.xlu0 %v113
    %v229 = vpop.xlane.xlu0 %228
    %230 = vadd.xlane.f32.xlu0 %v114
    %v231 = vpop.xlane.xlu0 %230
    %232 = vadd.xlane.f32.xlu0 %v115
    %v233 = vpop.xlane.xlu0 %232
    %v234 = vmul.f32 %v171, %v127
    %v235 = vmul.f32 %v173, %v127
    %v236 = vmul.f32 %v175, %v127
    %v237 = vmul.f32 %v177, %v127
    %v238 = vmul.f32 %v179, %v127
    %v239 = vmul.f32 %v181, %v127
    %v240 = vmul.f32 %v183, %v127
    %v241 = vmul.f32 %v185, %v127
    %v242 = vmul.f32 %v187, %v127
    %v243 = vmul.f32 %v189, %v127
    %v244 = vmul.f32 %v191, %v127
    %v245 = vmul.f32 %v193, %v127
    %v246 = vmul.f32 %v195, %v127
    %v247 = vmul.f32 %v197, %v127
    %v248 = vmul.f32 %v199, %v127
    %v249 = vmul.f32 %v201, %v127
    %v250 = vmul.f32 %v203, %v127
    %v251 = vmul.f32 %v205, %v127
    %v252 = vmul.f32 %v207, %v127
    %v253 = vmul.f32 %v209, %v127
    %v254 = vmul.f32 %v211, %v127
    %v255 = vmul.f32 %v213, %v127
    %v256 = vmul.f32 %v215, %v127
    %v257 = vmul.f32 %v217, %v127
    %v258 = vmul.f32 %v219, %v127
    %v259 = vmul.f32 %v221, %v127
    %v260 = vmul.f32 %v223, %v127
    %v261 = vmul.f32 %v225, %v127
    %v262 = vmul.f32 %v227, %v127
    %v263 = vmul.f32 %v229, %v127
    %v264 = vmul.f32 %v231, %v127
    %v265 = vmul.f32 %v233, %v127
    %v266 = vsub.f32 %v84, %v234
    %v267 = vsub.f32 %v85, %v235
    %v268 = vsub.f32 %v86, %v236
    %v269 = vsub.f32 %v87, %v237
    %v270 = vsub.f32 %v88, %v238
    %v271 = vsub.f32 %v89, %v239
    %v272 = vsub.f32 %v90, %v240
    %v273 = vsub.f32 %v91, %v241
    %v274 = vsub.f32 %v92, %v242
    %v275 = vsub.f32 %v93, %v243
    %v276 = vsub.f32 %v94, %v244
    %v277 = vsub.f32 %v95, %v245
    %v278 = vsub.f32 %v96, %v246
    %v279 = vsub.f32 %v97, %v247
    %v280 = vsub.f32 %v98, %v248
    %v281 = vsub.f32 %v99, %v249
    %v282 = vsub.f32 %v100, %v250
    %v283 = vsub.f32 %v101, %v251
    %v284 = vsub.f32 %v102, %v252
    %v285 = vsub.f32 %v103, %v253
    %v286 = vsub.f32 %v104, %v254
    %v287 = vsub.f32 %v105, %v255
    %v288 = vsub.f32 %v106, %v256
    %v289 = vsub.f32 %v107, %v257
    %v290 = vsub.f32 %v108, %v258
    %v291 = vsub.f32 %v109, %v259
    %v292 = vsub.f32 %v110, %v260
    %v293 = vsub.f32 %v111, %v261
    %v294 = vsub.f32 %v112, %v262
    %v295 = vsub.f32 %v113, %v263
    %v296 = vsub.f32 %v114, %v264
    %v297 = vsub.f32 %v115, %v265
    %v298 = vmul.f32 %v266, %v266
    %v299 = vmul.f32 %v267, %v267
    %v300 = vmul.f32 %v268, %v268
    %v301 = vmul.f32 %v269, %v269
    %v302 = vmul.f32 %v270, %v270
    %v303 = vmul.f32 %v271, %v271
    %v304 = vmul.f32 %v272, %v272
    %v305 = vmul.f32 %v273, %v273
    %v306 = vmul.f32 %v274, %v274
    %v307 = vmul.f32 %v275, %v275
    %v308 = vmul.f32 %v276, %v276
    %v309 = vmul.f32 %v277, %v277
    %v310 = vmul.f32 %v278, %v278
    %v311 = vmul.f32 %v279, %v279
    %v312 = vmul.f32 %v280, %v280
    %v313 = vmul.f32 %v281, %v281
    %v314 = vmul.f32 %v282, %v282
    %v315 = vmul.f32 %v283, %v283
    %v316 = vmul.f32 %v284, %v284
    %v317 = vmul.f32 %v285, %v285
    %v318 = vmul.f32 %v286, %v286
    %v319 = vmul.f32 %v287, %v287
    %v320 = vmul.f32 %v288, %v288
    %v321 = vmul.f32 %v289, %v289
    %v322 = vmul.f32 %v290, %v290
    %v323 = vmul.f32 %v291, %v291
    %v324 = vmul.f32 %v292, %v292
    %v325 = vmul.f32 %v293, %v293
    %v326 = vmul.f32 %v294, %v294
    %v327 = vmul.f32 %v295, %v295
    %v328 = vmul.f32 %v296, %v296
    %v329 = vmul.f32 %v297, %v297
    %330 = vadd.xlane.f32.xlu0 %v298
    %v331 = vpop.xlane.xlu0 %330
    %332 = vadd.xlane.f32.xlu0 %v299
    %v333 = vpop.xlane.xlu0 %332
    %334 = vadd.xlane.f32.xlu0 %v300
    %v335 = vpop.xlane.xlu0 %334
    %336 = vadd.xlane.f32.xlu0 %v301
    %v337 = vpop.xlane.xlu0 %336
    %338 = vadd.xlane.f32.xlu0 %v302
    %v339 = vpop.xlane.xlu0 %338
    %340 = vadd.xlane.f32.xlu0 %v303
    %v341 = vpop.xlane.xlu0 %340
    %342 = vadd.xlane.f32.xlu0 %v304
    %v343 = vpop.xlane.xlu0 %342
    %344 = vadd.xlane.f32.xlu0 %v305
    %v345 = vpop.xlane.xlu0 %344
    %346 = vadd.xlane.f32.xlu0 %v306
    %v347 = vpop.xlane.xlu0 %346
    %348 = vadd.xlane.f32.xlu0 %v307
    %v349 = vpop.xlane.xlu0 %348
    %350 = vadd.xlane.f32.xlu0 %v308
    %v351 = vpop.xlane.xlu0 %350
    %352 = vadd.xlane.f32.xlu0 %v309
    %v353 = vpop.xlane.xlu0 %352
    %354 = vadd.xlane.f32.xlu0 %v310
    %v355 = vpop.xlane.xlu0 %354
    %356 = vadd.xlane.f32.xlu0 %v311
    %v357 = vpop.xlane.xlu0 %356
    %358 = vadd.xlane.f32.xlu0 %v312
    %v359 = vpop.xlane.xlu0 %358
    %360 = vadd.xlane.f32.xlu0 %v313
    %v361 = vpop.xlane.xlu0 %360
    %362 = vadd.xlane.f32.xlu0 %v314
    %v363 = vpop.xlane.xlu0 %362
    %364 = vadd.xlane.f32.xlu0 %v315
    %v365 = vpop.xlane.xlu0 %364
    %366 = vadd.xlane.f32.xlu0 %v316
    %v367 = vpop.xlane.xlu0 %366
    %368 = vadd.xlane.f32.xlu0 %v317
    %v369 = vpop.xlane.xlu0 %368
    %370 = vadd.xlane.f32.xlu0 %v318
    %v371 = vpop.xlane.xlu0 %370
    %372 = vadd.xlane.f32.xlu0 %v319
    %v373 = vpop.xlane.xlu0 %372
    %374 = vadd.xlane.f32.xlu0 %v320
    %v375 = vpop.xlane.xlu0 %374
    %376 = vadd.xlane.f32.xlu0 %v321
    %v377 = vpop.xlane.xlu0 %376
    %378 = vadd.xlane.f32.xlu0 %v322
    %v379 = vpop.xlane.xlu0 %378
    %380 = vadd.xlane.f32.xlu0 %v323
    %v381 = vpop.xlane.xlu0 %380
    %382 = vadd.xlane.f32.xlu0 %v324
    %v383 = vpop.xlane.xlu0 %382
    %384 = vadd.xlane.f32.xlu0 %v325
    %v385 = vpop.xlane.xlu0 %384
    %386 = vadd.xlane.f32.xlu0 %v326
    %v387 = vpop.xlane.xlu0 %386
    %388 = vadd.xlane.f32.xlu0 %v327
    %v389 = vpop.xlane.xlu0 %388
    %390 = vadd.xlane.f32.xlu0 %v328
    %v391 = vpop.xlane.xlu0 %390
    %392 = vadd.xlane.f32.xlu0 %v329
    %v393 = vpop.xlane.xlu0 %392
    %v394 = vmul.f32 %v331, %v127
    %v395 = vmul.f32 %v333, %v127
    %v396 = vmul.f32 %v335, %v127
    %v397 = vmul.f32 %v337, %v127
    %v398 = vmul.f32 %v339, %v127
    %v399 = vmul.f32 %v341, %v127
    %v400 = vmul.f32 %v343, %v127
    %v401 = vmul.f32 %v345, %v127
    %v402 = vmul.f32 %v347, %v127
    %v403 = vmul.f32 %v349, %v127
    %v404 = vmul.f32 %v351, %v127
    %v405 = vmul.f32 %v353, %v127
    %v406 = vmul.f32 %v355, %v127
    %v407 = vmul.f32 %v357, %v127
    %v408 = vmul.f32 %v359, %v127
    %v409 = vmul.f32 %v361, %v127
    %v410 = vmul.f32 %v363, %v127
    %v411 = vmul.f32 %v365, %v127
    %v412 = vmul.f32 %v367, %v127
    %v413 = vmul.f32 %v369, %v127
    %v414 = vmul.f32 %v371, %v127
    %v415 = vmul.f32 %v373, %v127
    %v416 = vmul.f32 %v375, %v127
    %v417 = vmul.f32 %v377, %v127
    %v418 = vmul.f32 %v379, %v127
    %v419 = vmul.f32 %v381, %v127
    %v420 = vmul.f32 %v383, %v127
    %v421 = vmul.f32 %v385, %v127
    %v422 = vmul.f32 %v387, %v127
    %v423 = vmul.f32 %v389, %v127
    %v424 = vmul.f32 %v391, %v127
    %v425 = vmul.f32 %v393, %v127
    %v426 = vadd.f32 %v394, 1e-05
    %v427 = vadd.f32 %v395, 1e-05
    %v428 = vadd.f32 %v396, 1e-05
    %v429 = vadd.f32 %v397, 1e-05
    %v430 = vadd.f32 %v398, 1e-05
    %v431 = vadd.f32 %v399, 1e-05
    %v432 = vadd.f32 %v400, 1e-05
    %v433 = vadd.f32 %v401, 1e-05
    %v434 = vadd.f32 %v402, 1e-05
    %v435 = vadd.f32 %v403, 1e-05
    %v436 = vadd.f32 %v404, 1e-05
    %v437 = vadd.f32 %v405, 1e-05
    %v438 = vadd.f32 %v406, 1e-05
    %v439 = vadd.f32 %v407, 1e-05
    %v440 = vadd.f32 %v408, 1e-05
    %v441 = vadd.f32 %v409, 1e-05
    %v442 = vadd.f32 %v410, 1e-05
    %v443 = vadd.f32 %v411, 1e-05
    %v444 = vadd.f32 %v412, 1e-05
    %v445 = vadd.f32 %v413, 1e-05
    %v446 = vadd.f32 %v414, 1e-05
    %v447 = vadd.f32 %v415, 1e-05
    %v448 = vadd.f32 %v416, 1e-05
    %v449 = vadd.f32 %v417, 1e-05
    %v450 = vadd.f32 %v418, 1e-05
    %v451 = vadd.f32 %v419, 1e-05
    %v452 = vadd.f32 %v420, 1e-05
    %v453 = vadd.f32 %v421, 1e-05
    %v454 = vadd.f32 %v422, 1e-05
    %v455 = vadd.f32 %v423, 1e-05
    %v456 = vadd.f32 %v424, 1e-05
    %v457 = vadd.f32 %v425, 1e-05
    %v458 = vrsqrt.pop %v426
    %v459 = vmul.f32 %v458, %v426
    %v460 = vmul.f32 %v459, %v458
    %v461 = vmul.f32 0.5, %v460
    %v462 = vsub.f32 1.5, %v461
    %v463 = vmul.f32 %v458, %v462
    %vm464 = vweird.f32 %v426
    %vm465 = vweird.f32 %v458
    %vm466 = vmor %vm464, %vm465
    %v467 = vsel %vm466, %v458, %v463
    %v468 = vrsqrt.pop %v427
    %v469 = vmul.f32 %v468, %v427
    %v470 = vmul.f32 %v469, %v468
    %v471 = vmul.f32 0.5, %v470
    %v472 = vsub.f32 1.5, %v471
    %v473 = vmul.f32 %v468, %v472
    %vm474 = vweird.f32 %v427
    %vm475 = vweird.f32 %v468
    %vm476 = vmor %vm474, %vm475
    %v477 = vsel %vm476, %v468, %v473
    %v478 = vrsqrt.pop %v428
    %v479 = vmul.f32 %v478, %v428
    %v480 = vmul.f32 %v479, %v478
    %v481 = vmul.f32 0.5, %v480
    %v482 = vsub.f32 1.5, %v481
    %v483 = vmul.f32 %v478, %v482
    %vm484 = vweird.f32 %v428
    %vm485 = vweird.f32 %v478
    %vm486 = vmor %vm484, %vm485
    %v487 = vsel %vm486, %v478, %v483
    %v488 = vrsqrt.pop %v429
    %v489 = vmul.f32 %v488, %v429
    %v490 = vmul.f32 %v489, %v488
    %v491 = vmul.f32 0.5, %v490
    %v492 = vsub.f32 1.5, %v491
    %v493 = vmul.f32 %v488, %v492
    %vm494 = vweird.f32 %v429
    %vm495 = vweird.f32 %v488
    %vm496 = vmor %vm494, %vm495
    %v497 = vsel %vm496, %v488, %v493
    %v498 = vrsqrt.pop %v430
    %v499 = vmul.f32 %v498, %v430
    %v500 = vmul.f32 %v499, %v498
    %v501 = vmul.f32 0.5, %v500
    %v502 = vsub.f32 1.5, %v501
    %v503 = vmul.f32 %v498, %v502
    %vm504 = vweird.f32 %v430
    %vm505 = vweird.f32 %v498
    %vm506 = vmor %vm504, %vm505
    %v507 = vsel %vm506, %v498, %v503
    %v508 = vrsqrt.pop %v431
    %v509 = vmul.f32 %v508, %v431
    %v510 = vmul.f32 %v509, %v508
    %v511 = vmul.f32 0.5, %v510
    %v512 = vsub.f32 1.5, %v511
    %v513 = vmul.f32 %v508, %v512
    %vm514 = vweird.f32 %v431
    %vm515 = vweird.f32 %v508
    %vm516 = vmor %vm514, %vm515
    %v517 = vsel %vm516, %v508, %v513
    %v518 = vrsqrt.pop %v432
    %v519 = vmul.f32 %v518, %v432
    %v520 = vmul.f32 %v519, %v518
    %v521 = vmul.f32 0.5, %v520
    %v522 = vsub.f32 1.5, %v521
    %v523 = vmul.f32 %v518, %v522
    %vm524 = vweird.f32 %v432
    %vm525 = vweird.f32 %v518
    %vm526 = vmor %vm524, %vm525
    %v527 = vsel %vm526, %v518, %v523
    %v528 = vrsqrt.pop %v433
    %v529 = vmul.f32 %v528, %v433
    %v530 = vmul.f32 %v529, %v528
    %v531 = vmul.f32 0.5, %v530
    %v532 = vsub.f32 1.5, %v531
    %v533 = vmul.f32 %v528, %v532
    %vm534 = vweird.f32 %v433
    %vm535 = vweird.f32 %v528
    %vm536 = vmor %vm534, %vm535
    %v537 = vsel %vm536, %v528, %v533
    %v538 = vrsqrt.pop %v434
    %v539 = vmul.f32 %v538, %v434
    %v540 = vmul.f32 %v539, %v538
    %v541 = vmul.f32 0.5, %v540
    %v542 = vsub.f32 1.5, %v541
    %v543 = vmul.f32 %v538, %v542
    %vm544 = vweird.f32 %v434
    %vm545 = vweird.f32 %v538
    %vm546 = vmor %vm544, %vm545
    %v547 = vsel %vm546, %v538, %v543
    %v548 = vrsqrt.pop %v435
    %v549 = vmul.f32 %v548, %v435
    %v550 = vmul.f32 %v549, %v548
    %v551 = vmul.f32 0.5, %v550
    %v552 = vsub.f32 1.5, %v551
    %v553 = vmul.f32 %v548, %v552
    %vm554 = vweird.f32 %v435
    %vm555 = vweird.f32 %v548
    %vm556 = vmor %vm554, %vm555
    %v557 = vsel %vm556, %v548, %v553
    %v558 = vrsqrt.pop %v436
    %v559 = vmul.f32 %v558, %v436
    %v560 = vmul.f32 %v559, %v558
    %v561 = vmul.f32 0.5, %v560
    %v562 = vsub.f32 1.5, %v561
    %v563 = vmul.f32 %v558, %v562
    %vm564 = vweird.f32 %v436
    %vm565 = vweird.f32 %v558
    %vm566 = vmor %vm564, %vm565
    %v567 = vsel %vm566, %v558, %v563
    %v568 = vrsqrt.pop %v437
    %v569 = vmul.f32 %v568, %v437
    %v570 = vmul.f32 %v569, %v568
    %v571 = vmul.f32 0.5, %v570
    %v572 = vsub.f32 1.5, %v571
    %v573 = vmul.f32 %v568, %v572
    %vm574 = vweird.f32 %v437
    %vm575 = vweird.f32 %v568
    %vm576 = vmor %vm574, %vm575
    %v577 = vsel %vm576, %v568, %v573
    %v578 = vrsqrt.pop %v438
    %v579 = vmul.f32 %v578, %v438
    %v580 = vmul.f32 %v579, %v578
    %v581 = vmul.f32 0.5, %v580
    %v582 = vsub.f32 1.5, %v581
    %v583 = vmul.f32 %v578, %v582
    %vm584 = vweird.f32 %v438
    %vm585 = vweird.f32 %v578
    %vm586 = vmor %vm584, %vm585
    %v587 = vsel %vm586, %v578, %v583
    %v588 = vrsqrt.pop %v439
    %v589 = vmul.f32 %v588, %v439
    %v590 = vmul.f32 %v589, %v588
    %v591 = vmul.f32 0.5, %v590
    %v592 = vsub.f32 1.5, %v591
    %v593 = vmul.f32 %v588, %v592
    %vm594 = vweird.f32 %v439
    %vm595 = vweird.f32 %v588
    %vm596 = vmor %vm594, %vm595
    %v597 = vsel %vm596, %v588, %v593
    %v598 = vrsqrt.pop %v440
    %v599 = vmul.f32 %v598, %v440
    %v600 = vmul.f32 %v599, %v598
    %v601 = vmul.f32 0.5, %v600
    %v602 = vsub.f32 1.5, %v601
    %v603 = vmul.f32 %v598, %v602
    %vm604 = vweird.f32 %v440
    %vm605 = vweird.f32 %v598
    %vm606 = vmor %vm604, %vm605
    %v607 = vsel %vm606, %v598, %v603
    %v608 = vrsqrt.pop %v441
    %v609 = vmul.f32 %v608, %v441
    %v610 = vmul.f32 %v609, %v608
    %v611 = vmul.f32 0.5, %v610
    %v612 = vsub.f32 1.5, %v611
    %v613 = vmul.f32 %v608, %v612
    %vm614 = vweird.f32 %v441
    %vm615 = vweird.f32 %v608
    %vm616 = vmor %vm614, %vm615
    %v617 = vsel %vm616, %v608, %v613
    %v618 = vrsqrt.pop %v442
    %v619 = vmul.f32 %v618, %v442
    %v620 = vmul.f32 %v619, %v618
    %v621 = vmul.f32 0.5, %v620
    %v622 = vsub.f32 1.5, %v621
    %v623 = vmul.f32 %v618, %v622
    %vm624 = vweird.f32 %v442
    %vm625 = vweird.f32 %v618
    %vm626 = vmor %vm624, %vm625
    %v627 = vsel %vm626, %v618, %v623
    %v628 = vrsqrt.pop %v443
    %v629 = vmul.f32 %v628, %v443
    %v630 = vmul.f32 %v629, %v628
    %v631 = vmul.f32 0.5, %v630
    %v632 = vsub.f32 1.5, %v631
    %v633 = vmul.f32 %v628, %v632
    %vm634 = vweird.f32 %v443
    %vm635 = vweird.f32 %v628
    %vm636 = vmor %vm634, %vm635
    %v637 = vsel %vm636, %v628, %v633
    %v638 = vrsqrt.pop %v444
    %v639 = vmul.f32 %v638, %v444
    %v640 = vmul.f32 %v639, %v638
    %v641 = vmul.f32 0.5, %v640
    %v642 = vsub.f32 1.5, %v641
    %v643 = vmul.f32 %v638, %v642
    %vm644 = vweird.f32 %v444
    %vm645 = vweird.f32 %v638
    %vm646 = vmor %vm644, %vm645
    %v647 = vsel %vm646, %v638, %v643
    %v648 = vrsqrt.pop %v445
    %v649 = vmul.f32 %v648, %v445
    %v650 = vmul.f32 %v649, %v648
    %v651 = vmul.f32 0.5, %v650
    %v652 = vsub.f32 1.5, %v651
    %v653 = vmul.f32 %v648, %v652
    %vm654 = vweird.f32 %v445
    %vm655 = vweird.f32 %v648
    %vm656 = vmor %vm654, %vm655
    %v657 = vsel %vm656, %v648, %v653
    %v658 = vrsqrt.pop %v446
    %v659 = vmul.f32 %v658, %v446
    %v660 = vmul.f32 %v659, %v658
    %v661 = vmul.f32 0.5, %v660
    %v662 = vsub.f32 1.5, %v661
    %v663 = vmul.f32 %v658, %v662
    %vm664 = vweird.f32 %v446
    %vm665 = vweird.f32 %v658
    %vm666 = vmor %vm664, %vm665
    %v667 = vsel %vm666, %v658, %v663
    %v668 = vrsqrt.pop %v447
    %v669 = vmul.f32 %v668, %v447
    %v670 = vmul.f32 %v669, %v668
    %v671 = vmul.f32 0.5, %v670
    %v672 = vsub.f32 1.5, %v671
    %v673 = vmul.f32 %v668, %v672
    %vm674 = vweird.f32 %v447
    %vm675 = vweird.f32 %v668
    %vm676 = vmor %vm674, %vm675
    %v677 = vsel %vm676, %v668, %v673
    %v678 = vrsqrt.pop %v448
    %v679 = vmul.f32 %v678, %v448
    %v680 = vmul.f32 %v679, %v678
    %v681 = vmul.f32 0.5, %v680
    %v682 = vsub.f32 1.5, %v681
    %v683 = vmul.f32 %v678, %v682
    %vm684 = vweird.f32 %v448
    %vm685 = vweird.f32 %v678
    %vm686 = vmor %vm684, %vm685
    %v687 = vsel %vm686, %v678, %v683
    %v688 = vrsqrt.pop %v449
    %v689 = vmul.f32 %v688, %v449
    %v690 = vmul.f32 %v689, %v688
    %v691 = vmul.f32 0.5, %v690
    %v692 = vsub.f32 1.5, %v691
    %v693 = vmul.f32 %v688, %v692
    %vm694 = vweird.f32 %v449
    %vm695 = vweird.f32 %v688
    %vm696 = vmor %vm694, %vm695
    %v697 = vsel %vm696, %v688, %v693
    %v698 = vrsqrt.pop %v450
    %v699 = vmul.f32 %v698, %v450
    %v700 = vmul.f32 %v699, %v698
    %v701 = vmul.f32 0.5, %v700
    %v702 = vsub.f32 1.5, %v701
    %v703 = vmul.f32 %v698, %v702
    %vm704 = vweird.f32 %v450
    %vm705 = vweird.f32 %v698
    %vm706 = vmor %vm704, %vm705
    %v707 = vsel %vm706, %v698, %v703
    %v708 = vrsqrt.pop %v451
    %v709 = vmul.f32 %v708, %v451
    %v710 = vmul.f32 %v709, %v708
    %v711 = vmul.f32 0.5, %v710
    %v712 = vsub.f32 1.5, %v711
    %v713 = vmul.f32 %v708, %v712
    %vm714 = vweird.f32 %v451
    %vm715 = vweird.f32 %v708
    %vm716 = vmor %vm714, %vm715
    %v717 = vsel %vm716, %v708, %v713
    %v718 = vrsqrt.pop %v452
    %v719 = vmul.f32 %v718, %v452
    %v720 = vmul.f32 %v719, %v718
    %v721 = vmul.f32 0.5, %v720
    %v722 = vsub.f32 1.5, %v721
    %v723 = vmul.f32 %v718, %v722
    %vm724 = vweird.f32 %v452
    %vm725 = vweird.f32 %v718
    %vm726 = vmor %vm724, %vm725
    %v727 = vsel %vm726, %v718, %v723
    %v728 = vrsqrt.pop %v453
    %v729 = vmul.f32 %v728, %v453
    %v730 = vmul.f32 %v729, %v728
    %v731 = vmul.f32 0.5, %v730
    %v732 = vsub.f32 1.5, %v731
    %v733 = vmul.f32 %v728, %v732
    %vm734 = vweird.f32 %v453
    %vm735 = vweird.f32 %v728
    %vm736 = vmor %vm734, %vm735
    %v737 = vsel %vm736, %v728, %v733
    %v738 = vrsqrt.pop %v454
    %v739 = vmul.f32 %v738, %v454
    %v740 = vmul.f32 %v739, %v738
    %v741 = vmul.f32 0.5, %v740
    %v742 = vsub.f32 1.5, %v741
    %v743 = vmul.f32 %v738, %v742
    %vm744 = vweird.f32 %v454
    %vm745 = vweird.f32 %v738
    %vm746 = vmor %vm744, %vm745
    %v747 = vsel %vm746, %v738, %v743
    %v748 = vrsqrt.pop %v455
    %v749 = vmul.f32 %v748, %v455
    %v750 = vmul.f32 %v749, %v748
    %v751 = vmul.f32 0.5, %v750
    %v752 = vsub.f32 1.5, %v751
    %v753 = vmul.f32 %v748, %v752
    %vm754 = vweird.f32 %v455
    %vm755 = vweird.f32 %v748
    %vm756 = vmor %vm754, %vm755
    %v757 = vsel %vm756, %v748, %v753
    %v758 = vrsqrt.pop %v456
    %v759 = vmul.f32 %v758, %v456
    %v760 = vmul.f32 %v759, %v758
    %v761 = vmul.f32 0.5, %v760
    %v762 = vsub.f32 1.5, %v761
    %v763 = vmul.f32 %v758, %v762
    %vm764 = vweird.f32 %v456
    %vm765 = vweird.f32 %v758
    %vm766 = vmor %vm764, %vm765
    %v767 = vsel %vm766, %v758, %v763
    %v768 = vrsqrt.pop %v457
    %v769 = vmul.f32 %v768, %v457
    %v770 = vmul.f32 %v769, %v768
    %v771 = vmul.f32 0.5, %v770
    %v772 = vsub.f32 1.5, %v771
    %v773 = vmul.f32 %v768, %v772
    %vm774 = vweird.f32 %v457
    %vm775 = vweird.f32 %v768
    %vm776 = vmor %vm774, %vm775
    %v777 = vsel %vm776, %v768, %v773
    %v778 = vmul.f32 %v266, %v467
    %v779 = vmul.f32 %v267, %v477
    %v780 = vmul.f32 %v268, %v487
    %v781 = vmul.f32 %v269, %v497
    %v782 = vmul.f32 %v270, %v507
    %v783 = vmul.f32 %v271, %v517
    %v784 = vmul.f32 %v272, %v527
    %v785 = vmul.f32 %v273, %v537
    %v786 = vmul.f32 %v274, %v547
    %v787 = vmul.f32 %v275, %v557
    %v788 = vmul.f32 %v276, %v567
    %v789 = vmul.f32 %v277, %v577
    %v790 = vmul.f32 %v278, %v587
    %v791 = vmul.f32 %v279, %v597
    %v792 = vmul.f32 %v280, %v607
    %v793 = vmul.f32 %v281, %v617
    %v794 = vmul.f32 %v282, %v627
    %v795 = vmul.f32 %v283, %v637
    %v796 = vmul.f32 %v284, %v647
    %v797 = vmul.f32 %v285, %v657
    %v798 = vmul.f32 %v286, %v667
    %v799 = vmul.f32 %v287, %v677
    %v800 = vmul.f32 %v288, %v687
    %v801 = vmul.f32 %v289, %v697
    %v802 = vmul.f32 %v290, %v707
    %v803 = vmul.f32 %v291, %v717
    %v804 = vmul.f32 %v292, %v727
    %v805 = vmul.f32 %v293, %v737
    %v806 = vmul.f32 %v294, %v747
    %v807 = vmul.f32 %v295, %v757
    %v808 = vmul.f32 %v296, %v767
    %v809 = vmul.f32 %v297, %v777
    %v810 = vperm.slane %v116, 2
    %v811 = vmul.f32 %v778, %v810
    %v812 = vmul.f32 %v779, %v810
    %v813 = vmul.f32 %v780, %v810
    %v814 = vmul.f32 %v781, %v810
    %v815 = vmul.f32 %v782, %v810
    %v816 = vmul.f32 %v783, %v810
    %v817 = vmul.f32 %v784, %v810
    %v818 = vmul.f32 %v785, %v810
    %v819 = vmul.f32 %v786, %v810
    %v820 = vmul.f32 %v787, %v810
    %v821 = vmul.f32 %v788, %v810
    %v822 = vmul.f32 %v789, %v810
    %v823 = vmul.f32 %v790, %v810
    %v824 = vmul.f32 %v791, %v810
    %v825 = vmul.f32 %v792, %v810
    %v826 = vmul.f32 %v793, %v810
    %v827 = vmul.f32 %v794, %v810
    %v828 = vmul.f32 %v795, %v810
    %v829 = vmul.f32 %v796, %v810
    %v830 = vmul.f32 %v797, %v810
    %v831 = vmul.f32 %v798, %v810
    %v832 = vmul.f32 %v799, %v810
    %v833 = vmul.f32 %v800, %v810
    %v834 = vmul.f32 %v801, %v810
    %v835 = vmul.f32 %v802, %v810
    %v836 = vmul.f32 %v803, %v810
    %v837 = vmul.f32 %v804, %v810
    %v838 = vmul.f32 %v805, %v810
    %v839 = vmul.f32 %v806, %v810
    %v840 = vmul.f32 %v807, %v810
    %v841 = vmul.f32 %v808, %v810
    %v842 = vmul.f32 %v809, %v810
    %v843 = vperm.slane %v116, 3
    %v844 = vadd.f32 %v811, %v843
    %v845 = vadd.f32 %v812, %v843
    %v846 = vadd.f32 %v813, %v843
    %v847 = vadd.f32 %v814, %v843
    %v848 = vadd.f32 %v815, %v843
    %v849 = vadd.f32 %v816, %v843
    %v850 = vadd.f32 %v817, %v843
    %v851 = vadd.f32 %v818, %v843
    %v852 = vadd.f32 %v819, %v843
    %v853 = vadd.f32 %v820, %v843
    %v854 = vadd.f32 %v821, %v843
    %v855 = vadd.f32 %v822, %v843
    %v856 = vadd.f32 %v823, %v843
    %v857 = vadd.f32 %v824, %v843
    %v858 = vadd.f32 %v825, %v843
    %v859 = vadd.f32 %v826, %v843
    %v860 = vadd.f32 %v827, %v843
    %v861 = vadd.f32 %v828, %v843
    %v862 = vadd.f32 %v829, %v843
    %v863 = vadd.f32 %v830, %v843
    %v864 = vadd.f32 %v831, %v843
    %v865 = vadd.f32 %v832, %v843
    %v866 = vadd.f32 %v833, %v843
    %v867 = vadd.f32 %v834, %v843
    %v868 = vadd.f32 %v835, %v843
    %v869 = vadd.f32 %v836, %v843
    %v870 = vadd.f32 %v837, %v843
    %v871 = vadd.f32 %v838, %v843
    %v872 = vadd.f32 %v839, %v843
    %v873 = vadd.f32 %v840, %v843
    %v874 = vadd.f32 %v841, %v843
    %v875 = vadd.f32 %v842, %v843
    %v876 = vld [vmem:[#allocation7] sm:$0xff]
    %v877 = vld [vmem:[#allocation7 + $0x8] sm:$0xff]
    %v878 = vld [vmem:[#allocation7 + $0x10] sm:$0xff]
    %v879 = vld [vmem:[#allocation7 + $0x18] sm:$0xff]
    %v880 = vld [vmem:[#allocation7 + $0x20] sm:$0xff]
    %v881 = vld [vmem:[#allocation7 + $0x28] sm:$0xff]
    %v882 = vld [vmem:[#allocation7 + $0x30] sm:$0xff]
    %v883 = vld [vmem:[#allocation7 + $0x38] sm:$0xff]
    %v884 = vld [vmem:[#allocation7 + $0x40] sm:$0xff]
    %v885 = vld [vmem:[#allocation7 + $0x48] sm:$0xff]
    %v886 = vld [vmem:[#allocation7 + $0x50] sm:$0xff]
    %v887 = vld [vmem:[#allocation7 + $0x58] sm:$0xff]
    %v888 = vld [vmem:[#allocation7 + $0x60] sm:$0xff]
    %v889 = vld [vmem:[#allocation7 + $0x68] sm:$0xff]
    %v890 = vld [vmem:[#allocation7 + $0x70] sm:$0xff]
    %v891 = vld [vmem:[#allocation7 + $0x78] sm:$0xff]
    %892 = vmatpush.msra.mxu0 %v891
    %893 = vmatpush.msra.mxu0 %v890
    %894 = vmatpush.msra.mxu0 %v889
    %895 = vmatpush.msra.mxu0 %v888
    %896 = vmatpush.msra.mxu0 %v887
    %897 = vmatpush.msra.mxu0 %v886
    %898 = vmatpush.msra.mxu0 %v885
    %899 = vmatpush.msra.mxu0 %v884
    %900 = vmatpush.msra.mxu0 %v883
    %901 = vmatpush.msra.mxu0 %v882
    %902 = vmatpush.msra.mxu0 %v881
    %903 = vmatpush.msra.mxu0 %v880
    %904 = vmatpush.msra.mxu0 %v879
    %905 = vmatpush.msra.mxu0 %v878
    %906 = vmatpush.msra.mxu0 %v877
    %907 = vmatpush.msra.mxu0 %v876
    %908 = vmatmul.f32.gmra.mxu0 %v844
    %v909 = vpop.f32.mrf.mxu0
    %v910 = vadd.f32 0.0, %v909
    %911 = vmatmul.f32.gmra.mxu0 %v845
    %v912 = vpop.f32.mrf.mxu0
    %v913 = vadd.f32 0.0, %v912
    %914 = vmatmul.f32.gmra.mxu0 %v846
    %v915 = vpop.f32.mrf.mxu0
    %v916 = vadd.f32 0.0, %v915
    %917 = vmatmul.f32.gmra.mxu0 %v847
    %v918 = vpop.f32.mrf.mxu0
    %v919 = vadd.f32 0.0, %v918
    %920 = vmatmul.f32.gmra.mxu0 %v848
    %v921 = vpop.f32.mrf.mxu0
    %v922 = vadd.f32 0.0, %v921
    %923 = vmatmul.f32.gmra.mxu0 %v849
    %v924 = vpop.f32.mrf.mxu0
    %v925 = vadd.f32 0.0, %v924
    %926 = vmatmul.f32.gmra.mxu0 %v850
    %v927 = vpop.f32.mrf.mxu0
    %v928 = vadd.f32 0.0, %v927
    %929 = vmatmul.f32.gmra.mxu0 %v851
    %v930 = vpop.f32.mrf.mxu0
    %v931 = vadd.f32 0.0, %v930
    %932 = vmatmul.f32.gmra.mxu0 %v852
    %v933 = vpop.f32.mrf.mxu0
    %v934 = vadd.f32 0.0, %v933
    %935 = vmatmul.f32.gmra.mxu0 %v853
    %v936 = vpop.f32.mrf.mxu0
    %v937 = vadd.f32 0.0, %v936
    %938 = vmatmul.f32.gmra.mxu0 %v854
    %v939 = vpop.f32.mrf.mxu0
    %v940 = vadd.f32 0.0, %v939
    %941 = vmatmul.f32.gmra.mxu0 %v855
    %v942 = vpop.f32.mrf.mxu0
    %v943 = vadd.f32 0.0, %v942
    %944 = vmatmul.f32.gmra.mxu0 %v856
    %v945 = vpop.f32.mrf.mxu0
    %v946 = vadd.f32 0.0, %v945
    %947 = vmatmul.f32.gmra.mxu0 %v857
    %v948 = vpop.f32.mrf.mxu0
    %v949 = vadd.f32 0.0, %v948
    %950 = vmatmul.f32.gmra.mxu0 %v858
    %v951 = vpop.f32.mrf.mxu0
    %v952 = vadd.f32 0.0, %v951
    %953 = vmatmul.f32.gmra.mxu0 %v859
    %v954 = vpop.f32.mrf.mxu0
    %v955 = vadd.f32 0.0, %v954
    %956 = vmatmul.f32.gmra.mxu0 %v860
    %v957 = vpop.f32.mrf.mxu0
    %v958 = vadd.f32 0.0, %v957
    %959 = vmatmul.f32.gmra.mxu0 %v861
    %v960 = vpop.f32.mrf.mxu0
    %v961 = vadd.f32 0.0, %v960
    %962 = vmatmul.f32.gmra.mxu0 %v862
    %v963 = vpop.f32.mrf.mxu0
    %v964 = vadd.f32 0.0, %v963
    %965 = vmatmul.f32.gmra.mxu0 %v863
    %v966 = vpop.f32.mrf.mxu0
    %v967 = vadd.f32 0.0, %v966
    %968 = vmatmul.f32.gmra.mxu0 %v864
    %v969 = vpop.f32.mrf.mxu0
    %v970 = vadd.f32 0.0, %v969
    %971 = vmatmul.f32.gmra.mxu0 %v865
    %v972 = vpop.f32.mrf.mxu0
    %v973 = vadd.f32 0.0, %v972
    %974 = vmatmul.f32.gmra.mxu0 %v866
    %v975 = vpop.f32.mrf.mxu0
    %v976 = vadd.f32 0.0, %v975
    %977 = vmatmul.f32.gmra.mxu0 %v867
    %v978 = vpop.f32.mrf.mxu0
    %v979 = vadd.f32 0.0, %v978
    %980 = vmatmul.f32.gmra.mxu0 %v868
    %v981 = vpop.f32.mrf.mxu0
    %v982 = vadd.f32 0.0, %v981
    %983 = vmatmul.f32.gmra.mxu0 %v869
    %v984 = vpop.f32.mrf.mxu0
    %v985 = vadd.f32 0.0, %v984
    %986 = vmatmul.f32.gmra.mxu0 %v870
    %v987 = vpop.f32.mrf.mxu0
    %v988 = vadd.f32 0.0, %v987
    %989 = vmatmul.f32.gmra.mxu0 %v871
    %v990 = vpop.f32.mrf.mxu0
    %v991 = vadd.f32 0.0, %v990
    %992 = vmatmul.f32.gmra.mxu0 %v872
    %v993 = vpop.f32.mrf.mxu0
    %v994 = vadd.f32 0.0, %v993
    %995 = vmatmul.f32.gmra.mxu0 %v873
    %v996 = vpop.f32.mrf.mxu0
    %v997 = vadd.f32 0.0, %v996
    %998 = vmatmul.f32.gmra.mxu0 %v874
    %v999 = vpop.f32.mrf.mxu0
    %v1000 = vadd.f32 0.0, %v999
    %1001 = vmatmul.f32.gmra.mxu0 %v875
    %v1002 = vpop.f32.mrf.mxu0
    %v1003 = vadd.f32 0.0, %v1002
    %1004 = vdwg.mxu0
    %vm1005 = vcmask 261120
    %v1007 = vsel %vm1005, %v168, 0
    %v1010 = vsel %vm1005, %v910, 0
    %v1013 = vsel %vm1005, %v913, 0
    %v1016 = vsel %vm1005, %v916, 0
    %v1019 = vsel %vm1005, %v919, 0
    %v1022 = vsel %vm1005, %v922, 0
    %v1025 = vsel %vm1005, %v925, 0
    %v1028 = vsel %vm1005, %v928, 0
    %v1031 = vsel %vm1005, %v931, 0
    %v1034 = vsel %vm1005, %v934, 0
    %v1037 = vsel %vm1005, %v937, 0
    %v1040 = vsel %vm1005, %v940, 0
    %v1043 = vsel %vm1005, %v943, 0
    %v1046 = vsel %vm1005, %v946, 0
    %v1049 = vsel %vm1005, %v949, 0
    %v1052 = vsel %vm1005, %v952, 0
    %v1055 = vsel %vm1005, %v955, 0
    %1057 = vmatpush.xpose.msra.mxu0 %v1055
    %1058 = vmatpush.xpose.msra.mxu0 %v1052
    %1059 = vmatpush.xpose.msra.mxu0 %v1049
    %1060 = vmatpush.xpose.msra.mxu0 %v1046
    %1061 = vmatpush.xpose.msra.mxu0 %v1043
    %1062 = vmatpush.xpose.msra.mxu0 %v1040
    %1063 = vmatpush.xpose.msra.mxu0 %v1037
    %1064 = vmatpush.xpose.msra.mxu0 %v1034
    %1065 = vmatpush.xpose.msra.mxu0 %v1031
    %1066 = vmatpush.xpose.msra.mxu0 %v1028
    %1067 = vmatpush.xpose.msra.mxu0 %v1025
    %1068 = vmatpush.xpose.msra.mxu0 %v1022
    %1069 = vmatpush.xpose.msra.mxu0 %v1019
    %1070 = vmatpush.xpose.msra.mxu0 %v1016
    %1071 = vmatpush.xpose.msra.mxu0 %v1013
    %1072 = vmatpush.xpose.msra.mxu0 %v1010
    %1073 = vmatmul.f32.gmra.mxu0 %v1007
    %v1074 = vpop.f32.mrf.mxu0
    %v1075 = vadd.f32 0.0, %v1074
    %1076 = vdwg.mxu0
    %v1078 = vsel %vm1005, %v169, 0
    %v1081 = vsel %vm1005, %v958, 0
    %v1084 = vsel %vm1005, %v961, 0
    %v1087 = vsel %vm1005, %v964, 0
    %v1090 = vsel %vm1005, %v967, 0
    %v1093 = vsel %vm1005, %v970, 0
    %v1096 = vsel %vm1005, %v973, 0
    %v1099 = vsel %vm1005, %v976, 0
    %v1102 = vsel %vm1005, %v979, 0
    %v1105 = vsel %vm1005, %v982, 0
    %v1108 = vsel %vm1005, %v985, 0
    %v1111 = vsel %vm1005, %v988, 0
    %v1114 = vsel %vm1005, %v991, 0
    %v1117 = vsel %vm1005, %v994, 0
    %v1120 = vsel %vm1005, %v997, 0
    %v1123 = vsel %vm1005, %v1000, 0
    %v1126 = vsel %vm1005, %v1003, 0
    %1128 = vmatpush.xpose.msra.mxu0 %v1126
    %1129 = vmatpush.xpose.msra.mxu0 %v1123
    %1130 = vmatpush.xpose.msra.mxu0 %v1120
    %1131 = vmatpush.xpose.msra.mxu0 %v1117
    %1132 = vmatpush.xpose.msra.mxu0 %v1114
    %1133 = vmatpush.xpose.msra.mxu0 %v1111
    %1134 = vmatpush.xpose.msra.mxu0 %v1108
    %1135 = vmatpush.xpose.msra.mxu0 %v1105
    %1136 = vmatpush.xpose.msra.mxu0 %v1102
    %1137 = vmatpush.xpose.msra.mxu0 %v1099
    %1138 = vmatpush.xpose.msra.mxu0 %v1096
    %1139 = vmatpush.xpose.msra.mxu0 %v1093
    %1140 = vmatpush.xpose.msra.mxu0 %v1090
    %1141 = vmatpush.xpose.msra.mxu0 %v1087
    %1142 = vmatpush.xpose.msra.mxu0 %v1084
    %1143 = vmatpush.xpose.msra.mxu0 %v1081
    %1144 = vmatmul.f32.gmra.mxu0 %v1078
    %v1145 = vpop.f32.mrf.mxu0
    %v1146 = vadd.f32 0.0, %v1145
    %1147 = vdwg.mxu0
    %1148 = vmax.xlane.f32.xlu0 %v1075
    %v1149 = vpop.xlane.xlu0 %1148
    %1150 = vmax.xlane.f32.xlu0 %v1146
    %v1151 = vpop.xlane.xlu0 %1150
    %v1152 = vsub.f32 %v1075, %v1149
    %v1153 = vsub.f32 %v1146, %v1151
    %v1154 = vmul.f32 %v1152, 1.442695
    %v1155 = vpow.pop %v1154
    %v1156 = vmul.f32 %v1153, 1.442695
    %v1157 = vpow.pop %v1156
    %1158 = vadd.xlane.f32.xlu0 %v1155
    %v1159 = vpop.xlane.xlu0 %1158
    %1160 = vadd.xlane.f32.xlu0 %v1157
    %v1161 = vpop.xlane.xlu0 %1160
    %v1162 = vrcp.pop %v1159
    %v1163 = vmul.f32 %v1159, %v1162
    %v1164 = vsub.f32 1.0, %v1163
    %v1165 = vmul.f32 %v1162, %v1164
    %v1166 = vadd.f32 %v1162, %v1165
    %vm1167 = vweird.f32 %v1159
    %vm1168 = vweird.f32 %v1162
    %vm1169 = vmor %vm1167, %vm1168
    %v1170 = vsel %vm1169, %v1162, %v1166
    %v1171 = vand.u32 2147483647, %v1159
    %vm1172 = vcmp.eq.f32.partialorder %v1171, 8.507059e+37
    %v1173 = vand.u32 %v1159, 2147483648
    %v1174 = vor.u32 1.1754944e-38, %v1173
    %v1175 = vsel %vm1172, %v1174, %v1170
    %v1176 = vrcp.pop %v1161
    %v1177 = vmul.f32 %v1161, %v1176
    %v1178 = vsub.f32 1.0, %v1177
    %v1179 = vmul.f32 %v1176, %v1178
    %v1180 = vadd.f32 %v1176, %v1179
    %vm1181 = vweird.f32 %v1161
    %vm1182 = vweird.f32 %v1176
    %vm1183 = vmor %vm1181, %vm1182
    %v1184 = vsel %vm1183, %v1176, %v1180
    %v1185 = vand.u32 2147483647, %v1161
    %vm1186 = vcmp.eq.f32.partialorder %v1185, 8.507059e+37
    %v1187 = vand.u32 %v1161, 2147483648
    %v1188 = vor.u32 1.1754944e-38, %v1187
    %v1189 = vsel %vm1186, %v1188, %v1184
    %v1190 = vmul.f32 %v1155, %v1175
    %v1191 = vmul.f32 %v1157, %v1189
    %1192 = vmatpush.msra.mxu0 %v859
    %1193 = vmatpush.msra.mxu0 %v858
    %1194 = vmatpush.msra.mxu0 %v857
    %1195 = vmatpush.msra.mxu0 %v856
    %1196 = vmatpush.msra.mxu0 %v855
    %1197 = vmatpush.msra.mxu0 %v854
    %1198 = vmatpush.msra.mxu0 %v853
    %1199 = vmatpush.msra.mxu0 %v852
    %1200 = vmatpush.msra.mxu0 %v851
    %1201 = vmatpush.msra.mxu0 %v850
    %1202 = vmatpush.msra.mxu0 %v849
    %1203 = vmatpush.msra.mxu0 %v848
    %1204 = vmatpush.msra.mxu0 %v847
    %1205 = vmatpush.msra.mxu0 %v846
    %1206 = vmatpush.msra.mxu0 %v845
    %1207 = vmatpush.msra.mxu0 %v844
    %1208 = vmatmul.f32.gmra.mxu0 %v1190
    %v1209 = vpop.f32.mrf.mxu0
    %v1210 = vadd.f32 0.0, %v1209
    %1211 = vdwg.mxu0
    %1212 = vmatpush.msra.mxu0 %v875
    %1213 = vmatpush.msra.mxu0 %v874
    %1214 = vmatpush.msra.mxu0 %v873
    %1215 = vmatpush.msra.mxu0 %v872
    %1216 = vmatpush.msra.mxu0 %v871
    %1217 = vmatpush.msra.mxu0 %v870
    %1218 = vmatpush.msra.mxu0 %v869
    %1219 = vmatpush.msra.mxu0 %v868
    %1220 = vmatpush.msra.mxu0 %v867
    %1221 = vmatpush.msra.mxu0 %v866
    %1222 = vmatpush.msra.mxu0 %v865
    %1223 = vmatpush.msra.mxu0 %v864
    %1224 = vmatpush.msra.mxu0 %v863
    %1225 = vmatpush.msra.mxu0 %v862
    %1226 = vmatpush.msra.mxu0 %v861
    %1227 = vmatpush.msra.mxu0 %v860
    %1228 = vmatmul.f32.gmra.mxu0 %v1191
    %v1229 = vpop.f32.mrf.mxu0
    %v1230 = vadd.f32 0.0, %v1229
    %1231 = vdwg.mxu0
    %1232 = vrot.lane.b32.xlu0 %v168, 96
    %v1233 = vpop.permute.xlu0 %1232
    %1234 = vrot.lane.b32.xlu0 %v910, 96
    %v1235 = vpop.permute.xlu0 %1234
    %1236 = vrot.lane.b32.xlu0 %v913, 96
    %v1237 = vpop.permute.xlu0 %1236
    %1238 = vrot.lane.b32.xlu0 %v916, 96
    %v1239 = vpop.permute.xlu0 %1238
    %1240 = vrot.lane.b32.xlu0 %v919, 96
    %v1241 = vpop.permute.xlu0 %1240
    %1242 = vrot.lane.b32.xlu0 %v922, 96
    %v1243 = vpop.permute.xlu0 %1242
    %1244 = vrot.lane.b32.xlu0 %v925, 96
    %v1245 = vpop.permute.xlu0 %1244
    %1246 = vrot.lane.b32.xlu0 %v928, 96
    %v1247 = vpop.permute.xlu0 %1246
    %1248 = vrot.lane.b32.xlu0 %v931, 96
    %v1249 = vpop.permute.xlu0 %1248
    %1250 = vrot.lane.b32.xlu0 %v934, 96
    %v1251 = vpop.permute.xlu0 %1250
    %1252 = vrot.lane.b32.xlu0 %v937, 96
    %v1253 = vpop.permute.xlu0 %1252
    %1254 = vrot.lane.b32.xlu0 %v940, 96
    %v1255 = vpop.permute.xlu0 %1254
    %1256 = vrot.lane.b32.xlu0 %v943, 96
    %v1257 = vpop.permute.xlu0 %1256
    %1258 = vrot.lane.b32.xlu0 %v946, 96
    %v1259 = vpop.permute.xlu0 %1258
    %1260 = vrot.lane.b32.xlu0 %v949, 96
    %v1261 = vpop.permute.xlu0 %1260
    %1262 = vrot.lane.b32.xlu0 %v952, 96
    %v1263 = vpop.permute.xlu0 %1262
    %1264 = vrot.lane.b32.xlu0 %v955, 96
    %v1265 = vpop.permute.xlu0 %1264
    %v1266 = vsel %vm1005, %v1233, 0
    %v1268 = vsel %vm1005, %v1235, 0
    %v1270 = vsel %vm1005, %v1237, 0
    %v1272 = vsel %vm1005, %v1239, 0
    %v1274 = vsel %vm1005, %v1241, 0
    %v1276 = vsel %vm1005, %v1243, 0
    %v1278 = vsel %vm1005, %v1245, 0
    %v1280 = vsel %vm1005, %v1247, 0
    %v1282 = vsel %vm1005, %v1249, 0
    %v1284 = vsel %vm1005, %v1251, 0
    %v1286 = vsel %vm1005, %v1253, 0
    %v1288 = vsel %vm1005, %v1255, 0
    %v1290 = vsel %vm1005, %v1257, 0
    %v1292 = vsel %vm1005, %v1259, 0
    %v1294 = vsel %vm1005, %v1261, 0
    %v1296 = vsel %vm1005, %v1263, 0
    %v1298 = vsel %vm1005, %v1265, 0
    %1300 = vmatpush.xpose.msra.mxu0 %v1298
    %1301 = vmatpush.xpose.msra.mxu0 %v1296
    %1302 = vmatpush.xpose.msra.mxu0 %v1294
    %1303 = vmatpush.xpose.msra.mxu0 %v1292
    %1304 = vmatpush.xpose.msra.mxu0 %v1290
    %1305 = vmatpush.xpose.msra.mxu0 %v1288
    %1306 = vmatpush.xpose.msra.mxu0 %v1286
    %1307 = vmatpush.xpose.msra.mxu0 %v1284
    %1308 = vmatpush.xpose.msra.mxu0 %v1282
    %1309 = vmatpush.xpose.msra.mxu0 %v1280
    %1310 = vmatpush.xpose.msra.mxu0 %v1278
    %1311 = vmatpush.xpose.msra.mxu0 %v1276
    %1312 = vmatpush.xpose.msra.mxu0 %v1274
    %1313 = vmatpush.xpose.msra.mxu0 %v1272
    %1314 = vmatpush.xpose.msra.mxu0 %v1270
    %1315 = vmatpush.xpose.msra.mxu0 %v1268
    %1316 = vmatmul.f32.gmra.mxu0 %v1266
    %v1317 = vpop.f32.mrf.mxu0
    %v1318 = vadd.f32 0.0, %v1317
    %1319 = vdwg.mxu0
    %1320 = vrot.lane.b32.xlu0 %v169, 96
    %v1321 = vpop.permute.xlu0 %1320
    %1322 = vrot.lane.b32.xlu0 %v958, 96
    %v1323 = vpop.permute.xlu0 %1322
    %1324 = vrot.lane.b32.xlu0 %v961, 96
    %v1325 = vpop.permute.xlu0 %1324
    %1326 = vrot.lane.b32.xlu0 %v964, 96
    %v1327 = vpop.permute.xlu0 %1326
    %1328 = vrot.lane.b32.xlu0 %v967, 96
    %v1329 = vpop.permute.xlu0 %1328
    %1330 = vrot.lane.b32.xlu0 %v970, 96
    %v1331 = vpop.permute.xlu0 %1330
    %1332 = vrot.lane.b32.xlu0 %v973, 96
    %v1333 = vpop.permute.xlu0 %1332
    %1334 = vrot.lane.b32.xlu0 %v976, 96
    %v1335 = vpop.permute.xlu0 %1334
    %1336 = vrot.lane.b32.xlu0 %v979, 96
    %v1337 = vpop.permute.xlu0 %1336
    %1338 = vrot.lane.b32.xlu0 %v982, 96
    %v1339 = vpop.permute.xlu0 %1338
    %1340 = vrot.lane.b32.xlu0 %v985, 96
    %v1341 = vpop.permute.xlu0 %1340
    %1342 = vrot.lane.b32.xlu0 %v988, 96
    %v1343 = vpop.permute.xlu0 %1342
    %1344 = vrot.lane.b32.xlu0 %v991, 96
    %v1345 = vpop.permute.xlu0 %1344
    %1346 = vrot.lane.b32.xlu0 %v994, 96
    %v1347 = vpop.permute.xlu0 %1346
    %1348 = vrot.lane.b32.xlu0 %v997, 96
    %v1349 = vpop.permute.xlu0 %1348
    %1350 = vrot.lane.b32.xlu0 %v1000, 96
    %v1351 = vpop.permute.xlu0 %1350
    %1352 = vrot.lane.b32.xlu0 %v1003, 96
    %v1353 = vpop.permute.xlu0 %1352
    %v1354 = vsel %vm1005, %v1321, 0
    %v1356 = vsel %vm1005, %v1323, 0
    %v1358 = vsel %vm1005, %v1325, 0
    %v1360 = vsel %vm1005, %v1327, 0
    %v1362 = vsel %vm1005, %v1329, 0
    %v1364 = vsel %vm1005, %v1331, 0
    %v1366 = vsel %vm1005, %v1333, 0
    %v1368 = vsel %vm1005, %v1335, 0
    %v1370 = vsel %vm1005, %v1337, 0
    %v1372 = vsel %vm1005, %v1339, 0
    %v1374 = vsel %vm1005, %v1341, 0
    %v1376 = vsel %vm1005, %v1343, 0
    %v1378 = vsel %vm1005, %v1345, 0
    %v1380 = vsel %vm1005, %v1347, 0
    %v1382 = vsel %vm1005, %v1349, 0
    %v1384 = vsel %vm1005, %v1351, 0
    %v1386 = vsel %vm1005, %v1353, 0
    %1388 = vmatpush.xpose.msra.mxu0 %v1386
    %1389 = vmatpush.xpose.msra.mxu0 %v1384
    %1390 = vmatpush.xpose.msra.mxu0 %v1382
    %1391 = vmatpush.xpose.msra.mxu0 %v1380
    %1392 = vmatpush.xpose.msra.mxu0 %v1378
    %1393 = vmatpush.xpose.msra.mxu0 %v1376
    %1394 = vmatpush.xpose.msra.mxu0 %v1374
    %1395 = vmatpush.xpose.msra.mxu0 %v1372
    %1396 = vmatpush.xpose.msra.mxu0 %v1370
    %1397 = vmatpush.xpose.msra.mxu0 %v1368
    %1398 = vmatpush.xpose.msra.mxu0 %v1366
    %1399 = vmatpush.xpose.msra.mxu0 %v1364
    %1400 = vmatpush.xpose.msra.mxu0 %v1362
    %1401 = vmatpush.xpose.msra.mxu0 %v1360
    %1402 = vmatpush.xpose.msra.mxu0 %v1358
    %1403 = vmatpush.xpose.msra.mxu0 %v1356
    %1404 = vmatmul.f32.gmra.mxu0 %v1354
    %v1405 = vpop.f32.mrf.mxu0
    %v1406 = vadd.f32 0.0, %v1405
    %1407 = vdwg.mxu0
    %1408 = vmax.xlane.f32.xlu0 %v1318
    %v1409 = vpop.xlane.xlu0 %1408
    %1410 = vmax.xlane.f32.xlu0 %v1406
    %v1411 = vpop.xlane.xlu0 %1410
    %v1412 = vsub.f32 %v1318, %v1409
    %v1413 = vsub.f32 %v1406, %v1411
    %v1414 = vmul.f32 %v1412, 1.442695
    %v1415 = vpow.pop %v1414
    %v1416 = vmul.f32 %v1413, 1.442695
    %v1417 = vpow.pop %v1416
    %1418 = vadd.xlane.f32.xlu0 %v1415
    %v1419 = vpop.xlane.xlu0 %1418
    %1420 = vadd.xlane.f32.xlu0 %v1417
    %v1421 = vpop.xlane.xlu0 %1420
    %v1422 = vrcp.pop %v1419
    %v1423 = vmul.f32 %v1419, %v1422
    %v1424 = vsub.f32 1.0, %v1423
    %v1425 = vmul.f32 %v1422, %v1424
    %v1426 = vadd.f32 %v1422, %v1425
    %vm1427 = vweird.f32 %v1419
    %vm1428 = vweird.f32 %v1422
    %vm1429 = vmor %vm1427, %vm1428
    %v1430 = vsel %vm1429, %v1422, %v1426
    %v1431 = vand.u32 2147483647, %v1419
    %vm1432 = vcmp.eq.f32.partialorder %v1431, 8.507059e+37
    %v1433 = vand.u32 %v1419, 2147483648
    %v1434 = vor.u32 1.1754944e-38, %v1433
    %v1435 = vsel %vm1432, %v1434, %v1430
    %v1436 = vrcp.pop %v1421
    %v1437 = vmul.f32 %v1421, %v1436
    %v1438 = vsub.f32 1.0, %v1437
    %v1439 = vmul.f32 %v1436, %v1438
    %v1440 = vadd.f32 %v1436, %v1439
    %vm1441 = vweird.f32 %v1421
    %vm1442 = vweird.f32 %v1436
    %vm1443 = vmor %vm1441, %vm1442
    %v1444 = vsel %vm1443, %v1436, %v1440
    %v1445 = vand.u32 2147483647, %v1421
    %vm1446 = vcmp.eq.f32.partialorder %v1445, 8.507059e+37
    %v1447 = vand.u32 %v1421, 2147483648
    %v1448 = vor.u32 1.1754944e-38, %v1447
    %v1449 = vsel %vm1446, %v1448, %v1444
    %v1450 = vmul.f32 %v1415, %v1435
    %v1451 = vmul.f32 %v1417, %v1449
    %1468 = vrot.lane.b32.xlu0 %v844, 96
    %v1469 = vpop.permute.xlu0 %1468
    %1470 = vrot.lane.b32.xlu0 %v845, 96
    %v1471 = vpop.permute.xlu0 %1470
    %1472 = vrot.lane.b32.xlu0 %v846, 96
    %v1473 = vpop.permute.xlu0 %1472
    %1474 = vrot.lane.b32.xlu0 %v847, 96
    %v1475 = vpop.permute.xlu0 %1474
    %1476 = vrot.lane.b32.xlu0 %v848, 96
    %v1477 = vpop.permute.xlu0 %1476
    %1478 = vrot.lane.b32.xlu0 %v849, 96
    %v1479 = vpop.permute.xlu0 %1478
    %1480 = vrot.lane.b32.xlu0 %v850, 96
    %v1481 = vpop.permute.xlu0 %1480
    %1482 = vrot.lane.b32.xlu0 %v851, 96
    %v1483 = vpop.permute.xlu0 %1482
    %1484 = vrot.lane.b32.xlu0 %v852, 96
    %v1485 = vpop.permute.xlu0 %1484
    %1486 = vrot.lane.b32.xlu0 %v853, 96
    %v1487 = vpop.permute.xlu0 %1486
    %1488 = vrot.lane.b32.xlu0 %v854, 96
    %v1489 = vpop.permute.xlu0 %1488
    %1490 = vrot.lane.b32.xlu0 %v855, 96
    %v1491 = vpop.permute.xlu0 %1490
    %1492 = vrot.lane.b32.xlu0 %v856, 96
    %v1493 = vpop.permute.xlu0 %1492
    %1494 = vrot.lane.b32.xlu0 %v857, 96
    %v1495 = vpop.permute.xlu0 %1494
    %1496 = vrot.lane.b32.xlu0 %v858, 96
    %v1497 = vpop.permute.xlu0 %1496
    %1498 = vrot.lane.b32.xlu0 %v859, 96
    %v1499 = vpop.permute.xlu0 %1498
    %1516 = vmatpush.msra.mxu0 %v1499
    %1517 = vmatpush.msra.mxu0 %v1497
    %1518 = vmatpush.msra.mxu0 %v1495
    %1519 = vmatpush.msra.mxu0 %v1493
    %1520 = vmatpush.msra.mxu0 %v1491
    %1521 = vmatpush.msra.mxu0 %v1489
    %1522 = vmatpush.msra.mxu0 %v1487
    %1523 = vmatpush.msra.mxu0 %v1485
    %1524 = vmatpush.msra.mxu0 %v1483
    %1525 = vmatpush.msra.mxu0 %v1481
    %1526 = vmatpush.msra.mxu0 %v1479
    %1527 = vmatpush.msra.mxu0 %v1477
    %1528 = vmatpush.msra.mxu0 %v1475
    %1529 = vmatpush.msra.mxu0 %v1473
    %1530 = vmatpush.msra.mxu0 %v1471
    %1531 = vmatpush.msra.mxu0 %v1469
    %1532 = vmatmul.f32.gmra.mxu0 %v1450
    %v1533 = vpop.f32.mrf.mxu0
    %v1534 = vadd.f32 0.0, %v1533
    %1535 = vdwg.mxu0
    %1552 = vrot.lane.b32.xlu0 %v860, 96
    %v1553 = vpop.permute.xlu0 %1552
    %1554 = vrot.lane.b32.xlu0 %v861, 96
    %v1555 = vpop.permute.xlu0 %1554
    %1556 = vrot.lane.b32.xlu0 %v862, 96
    %v1557 = vpop.permute.xlu0 %1556
    %1558 = vrot.lane.b32.xlu0 %v863, 96
    %v1559 = vpop.permute.xlu0 %1558
    %1560 = vrot.lane.b32.xlu0 %v864, 96
    %v1561 = vpop.permute.xlu0 %1560
    %1562 = vrot.lane.b32.xlu0 %v865, 96
    %v1563 = vpop.permute.xlu0 %1562
    %1564 = vrot.lane.b32.xlu0 %v866, 96
    %v1565 = vpop.permute.xlu0 %1564
    %1566 = vrot.lane.b32.xlu0 %v867, 96
    %v1567 = vpop.permute.xlu0 %1566
    %1568 = vrot.lane.b32.xlu0 %v868, 96
    %v1569 = vpop.permute.xlu0 %1568
    %1570 = vrot.lane.b32.xlu0 %v869, 96
    %v1571 = vpop.permute.xlu0 %1570
    %1572 = vrot.lane.b32.xlu0 %v870, 96
    %v1573 = vpop.permute.xlu0 %1572
    %1574 = vrot.lane.b32.xlu0 %v871, 96
    %v1575 = vpop.permute.xlu0 %1574
    %1576 = vrot.lane.b32.xlu0 %v872, 96
    %v1577 = vpop.permute.xlu0 %1576
    %1578 = vrot.lane.b32.xlu0 %v873, 96
    %v1579 = vpop.permute.xlu0 %1578
    %1580 = vrot.lane.b32.xlu0 %v874, 96
    %v1581 = vpop.permute.xlu0 %1580
    %1582 = vrot.lane.b32.xlu0 %v875, 96
    %v1583 = vpop.permute.xlu0 %1582
    %1600 = vmatpush.msra.mxu0 %v1583
    %1601 = vmatpush.msra.mxu0 %v1581
    %1602 = vmatpush.msra.mxu0 %v1579
    %1603 = vmatpush.msra.mxu0 %v1577
    %1604 = vmatpush.msra.mxu0 %v1575
    %1605 = vmatpush.msra.mxu0 %v1573
    %1606 = vmatpush.msra.mxu0 %v1571
    %1607 = vmatpush.msra.mxu0 %v1569
    %1608 = vmatpush.msra.mxu0 %v1567
    %1609 = vmatpush.msra.mxu0 %v1565
    %1610 = vmatpush.msra.mxu0 %v1563
    %1611 = vmatpush.msra.mxu0 %v1561
    %1612 = vmatpush.msra.mxu0 %v1559
    %1613 = vmatpush.msra.mxu0 %v1557
    %1614 = vmatpush.msra.mxu0 %v1555
    %1615 = vmatpush.msra.mxu0 %v1553
    %1616 = vmatmul.f32.gmra.mxu0 %v1451
    %v1617 = vpop.f32.mrf.mxu0
    %v1618 = vadd.f32 0.0, %v1617
    %1619 = vdwg.mxu0
    %1620 = vrot.lane.b32.xlu0 %v168, 64
    %v1621 = vpop.permute.xlu0 %1620
    %1622 = vrot.lane.b32.xlu0 %v910, 64
    %v1623 = vpop.permute.xlu0 %1622
    %1624 = vrot.lane.b32.xlu0 %v913, 64
    %v1625 = vpop.permute.xlu0 %1624
    %1626 = vrot.lane.b32.xlu0 %v916, 64
    %v1627 = vpop.permute.xlu0 %1626
    %1628 = vrot.lane.b32.xlu0 %v919, 64
    %v1629 = vpop.permute.xlu0 %1628
    %1630 = vrot.lane.b32.xlu0 %v922, 64
    %v1631 = vpop.permute.xlu0 %1630
    %1632 = vrot.lane.b32.xlu0 %v925, 64
    %v1633 = vpop.permute.xlu0 %1632
    %1634 = vrot.lane.b32.xlu0 %v928, 64
    %v1635 = vpop.permute.xlu0 %1634
    %1636 = vrot.lane.b32.xlu0 %v931, 64
    %v1637 = vpop.permute.xlu0 %1636
    %1638 = vrot.lane.b32.xlu0 %v934, 64
    %v1639 = vpop.permute.xlu0 %1638
    %1640 = vrot.lane.b32.xlu0 %v937, 64
    %v1641 = vpop.permute.xlu0 %1640
    %1642 = vrot.lane.b32.xlu0 %v940, 64
    %v1643 = vpop.permute.xlu0 %1642
    %1644 = vrot.lane.b32.xlu0 %v943, 64
    %v1645 = vpop.permute.xlu0 %1644
    %1646 = vrot.lane.b32.xlu0 %v946, 64
    %v1647 = vpop.permute.xlu0 %1646
    %1648 = vrot.lane.b32.xlu0 %v949, 64
    %v1649 = vpop.permute.xlu0 %1648
    %1650 = vrot.lane.b32.xlu0 %v952, 64
    %v1651 = vpop.permute.xlu0 %1650
    %1652 = vrot.lane.b32.xlu0 %v955, 64
    %v1653 = vpop.permute.xlu0 %1652
    %v1654 = vsel %vm1005, %v1621, 0
    %v1656 = vsel %vm1005, %v1623, 0
    %v1658 = vsel %vm1005, %v1625, 0
    %v1660 = vsel %vm1005, %v1627, 0
    %v1662 = vsel %vm1005, %v1629, 0
    %v1664 = vsel %vm1005, %v1631, 0
    %v1666 = vsel %vm1005, %v1633, 0
    %v1668 = vsel %vm1005, %v1635, 0
    %v1670 = vsel %vm1005, %v1637, 0
    %v1672 = vsel %vm1005, %v1639, 0
    %v1674 = vsel %vm1005, %v1641, 0
    %v1676 = vsel %vm1005, %v1643, 0
    %v1678 = vsel %vm1005, %v1645, 0
    %v1680 = vsel %vm1005, %v1647, 0
    %v1682 = vsel %vm1005, %v1649, 0
    %v1684 = vsel %vm1005, %v1651, 0
    %v1686 = vsel %vm1005, %v1653, 0
    %1688 = vmatpush.xpose.msra.mxu0 %v1686
    %1689 = vmatpush.xpose.msra.mxu0 %v1684
    %1690 = vmatpush.xpose.msra.mxu0 %v1682
    %1691 = vmatpush.xpose.msra.mxu0 %v1680
    %1692 = vmatpush.xpose.msra.mxu0 %v1678
    %1693 = vmatpush.xpose.msra.mxu0 %v1676
    %1694 = vmatpush.xpose.msra.mxu0 %v1674
    %1695 = vmatpush.xpose.msra.mxu0 %v1672
    %1696 = vmatpush.xpose.msra.mxu0 %v1670
    %1697 = vmatpush.xpose.msra.mxu0 %v1668
    %1698 = vmatpush.xpose.msra.mxu0 %v1666
    %1699 = vmatpush.xpose.msra.mxu0 %v1664
    %1700 = vmatpush.xpose.msra.mxu0 %v1662
    %1701 = vmatpush.xpose.msra.mxu0 %v1660
    %1702 = vmatpush.xpose.msra.mxu0 %v1658
    %1703 = vmatpush.xpose.msra.mxu0 %v1656
    %1704 = vmatmul.f32.gmra.mxu0 %v1654
    %v1705 = vpop.f32.mrf.mxu0
    %v1706 = vadd.f32 0.0, %v1705
    %1707 = vdwg.mxu0
    %1708 = vrot.lane.b32.xlu0 %v169, 64
    %v1709 = vpop.permute.xlu0 %1708
    %1710 = vrot.lane.b32.xlu0 %v958, 64
    %v1711 = vpop.permute.xlu0 %1710
    %1712 = vrot.lane.b32.xlu0 %v961, 64
    %v1713 = vpop.permute.xlu0 %1712
    %1714 = vrot.lane.b32.xlu0 %v964, 64
    %v1715 = vpop.permute.xlu0 %1714
    %1716 = vrot.lane.b32.xlu0 %v967, 64
    %v1717 = vpop.permute.xlu0 %1716
    %1718 = vrot.lane.b32.xlu0 %v970, 64
    %v1719 = vpop.permute.xlu0 %1718
    %1720 = vrot.lane.b32.xlu0 %v973, 64
    %v1721 = vpop.permute.xlu0 %1720
    %1722 = vrot.lane.b32.xlu0 %v976, 64
    %v1723 = vpop.permute.xlu0 %1722
    %1724 = vrot.lane.b32.xlu0 %v979, 64
    %v1725 = vpop.permute.xlu0 %1724
    %1726 = vrot.lane.b32.xlu0 %v982, 64
    %v1727 = vpop.permute.xlu0 %1726
    %1728 = vrot.lane.b32.xlu0 %v985, 64
    %v1729 = vpop.permute.xlu0 %1728
    %1730 = vrot.lane.b32.xlu0 %v988, 64
    %v1731 = vpop.permute.xlu0 %1730
    %1732 = vrot.lane.b32.xlu0 %v991, 64
    %v1733 = vpop.permute.xlu0 %1732
    %1734 = vrot.lane.b32.xlu0 %v994, 64
    %v1735 = vpop.permute.xlu0 %1734
    %1736 = vrot.lane.b32.xlu0 %v997, 64
    %v1737 = vpop.permute.xlu0 %1736
    %1738 = vrot.lane.b32.xlu0 %v1000, 64
    %v1739 = vpop.permute.xlu0 %1738
    %1740 = vrot.lane.b32.xlu0 %v1003, 64
    %v1741 = vpop.permute.xlu0 %1740
    %v1742 = vsel %vm1005, %v1709, 0
    %v1744 = vsel %vm1005, %v1711, 0
    %v1746 = vsel %vm1005, %v1713, 0
    %v1748 = vsel %vm1005, %v1715, 0
    %v1750 = vsel %vm1005, %v1717, 0
    %v1752 = vsel %vm1005, %v1719, 0
    %v1754 = vsel %vm1005, %v1721, 0
    %v1756 = vsel %vm1005, %v1723, 0
    %v1758 = vsel %vm1005, %v1725, 0
    %v1760 = vsel %vm1005, %v1727, 0
    %v1762 = vsel %vm1005, %v1729, 0
    %v1764 = vsel %vm1005, %v1731, 0
    %v1766 = vsel %vm1005, %v1733, 0
    %v1768 = vsel %vm1005, %v1735, 0
    %v1770 = vsel %vm1005, %v1737, 0
    %v1772 = vsel %vm1005, %v1739, 0
    %v1774 = vsel %vm1005, %v1741, 0
    %1776 = vmatpush.xpose.msra.mxu0 %v1774
    %1777 = vmatpush.xpose.msra.mxu0 %v1772
    %1778 = vmatpush.xpose.msra.mxu0 %v1770
    %1779 = vmatpush.xpose.msra.mxu0 %v1768
    %1780 = vmatpush.xpose.msra.mxu0 %v1766
    %1781 = vmatpush.xpose.msra.mxu0 %v1764
    %1782 = vmatpush.xpose.msra.mxu0 %v1762
    %1783 = vmatpush.xpose.msra.mxu0 %v1760
    %1784 = vmatpush.xpose.msra.mxu0 %v1758
    %1785 = vmatpush.xpose.msra.mxu0 %v1756
    %1786 = vmatpush.xpose.msra.mxu0 %v1754
    %1787 = vmatpush.xpose.msra.mxu0 %v1752
    %1788 = vmatpush.xpose.msra.mxu0 %v1750
    %1789 = vmatpush.xpose.msra.mxu0 %v1748
    %1790 = vmatpush.xpose.msra.mxu0 %v1746
    %1791 = vmatpush.xpose.msra.mxu0 %v1744
    %1792 = vmatmul.f32.gmra.mxu0 %v1742
    %v1793 = vpop.f32.mrf.mxu0
    %v1794 = vadd.f32 0.0, %v1793
    %1795 = vdwg.mxu0
    %1796 = vmax.xlane.f32.xlu0 %v1706
    %v1797 = vpop.xlane.xlu0 %1796
    %1798 = vmax.xlane.f32.xlu0 %v1794
    %v1799 = vpop.xlane.xlu0 %1798
    %v1800 = vsub.f32 %v1706, %v1797
    %v1801 = vsub.f32 %v1794, %v1799
    %v1802 = vmul.f32 %v1800, 1.442695
    %v1803 = vpow.pop %v1802
    %v1804 = vmul.f32 %v1801, 1.442695
    %v1805 = vpow.pop %v1804
    %1806 = vadd.xlane.f32.xlu0 %v1803
    %v1807 = vpop.xlane.xlu0 %1806
    %1808 = vadd.xlane.f32.xlu0 %v1805
    %v1809 = vpop.xlane.xlu0 %1808
    %v1810 = vrcp.pop %v1807
    %v1811 = vmul.f32 %v1807, %v1810
    %v1812 = vsub.f32 1.0, %v1811
    %v1813 = vmul.f32 %v1810, %v1812
    %v1814 = vadd.f32 %v1810, %v1813
    %vm1815 = vweird.f32 %v1807
    %vm1816 = vweird.f32 %v1810
    %vm1817 = vmor %vm1815, %vm1816
    %v1818 = vsel %vm1817, %v1810, %v1814
    %v1819 = vand.u32 2147483647, %v1807
    %vm1820 = vcmp.eq.f32.partialorder %v1819, 8.507059e+37
    %v1821 = vand.u32 %v1807, 2147483648
    %v1822 = vor.u32 1.1754944e-38, %v1821
    %v1823 = vsel %vm1820, %v1822, %v1818
    %v1824 = vrcp.pop %v1809
    %v1825 = vmul.f32 %v1809, %v1824
    %v1826 = vsub.f32 1.0, %v1825
    %v1827 = vmul.f32 %v1824, %v1826
    %v1828 = vadd.f32 %v1824, %v1827
    %vm1829 = vweird.f32 %v1809
    %vm1830 = vweird.f32 %v1824
    %vm1831 = vmor %vm1829, %vm1830
    %v1832 = vsel %vm1831, %v1824, %v1828
    %v1833 = vand.u32 2147483647, %v1809
    %vm1834 = vcmp.eq.f32.partialorder %v1833, 8.507059e+37
    %v1835 = vand.u32 %v1809, 2147483648
    %v1836 = vor.u32 1.1754944e-38, %v1835
    %v1837 = vsel %vm1834, %v1836, %v1832
    %v1838 = vmul.f32 %v1803, %v1823
    %v1839 = vmul.f32 %v1805, %v1837
    %1840 = vrot.lane.b32.xlu0 %v844, 64
    %v1841 = vpop.permute.xlu0 %1840
    %1842 = vrot.lane.b32.xlu0 %v845, 64
    %v1843 = vpop.permute.xlu0 %1842
    %1844 = vrot.lane.b32.xlu0 %v846, 64
    %v1845 = vpop.permute.xlu0 %1844
    %1846 = vrot.lane.b32.xlu0 %v847, 64
    %v1847 = vpop.permute.xlu0 %1846
    %1848 = vrot.lane.b32.xlu0 %v848, 64
    %v1849 = vpop.permute.xlu0 %1848
    %1850 = vrot.lane.b32.xlu0 %v849, 64
    %v1851 = vpop.permute.xlu0 %1850
    %1852 = vrot.lane.b32.xlu0 %v850, 64
    %v1853 = vpop.permute.xlu0 %1852
    %1854 = vrot.lane.b32.xlu0 %v851, 64
    %v1855 = vpop.permute.xlu0 %1854
    %1856 = vrot.lane.b32.xlu0 %v852, 64
    %v1857 = vpop.permute.xlu0 %1856
    %1858 = vrot.lane.b32.xlu0 %v853, 64
    %v1859 = vpop.permute.xlu0 %1858
    %1860 = vrot.lane.b32.xlu0 %v854, 64
    %v1861 = vpop.permute.xlu0 %1860
    %1862 = vrot.lane.b32.xlu0 %v855, 64
    %v1863 = vpop.permute.xlu0 %1862
    %1864 = vrot.lane.b32.xlu0 %v856, 64
    %v1865 = vpop.permute.xlu0 %1864
    %1866 = vrot.lane.b32.xlu0 %v857, 64
    %v1867 = vpop.permute.xlu0 %1866
    %1868 = vrot.lane.b32.xlu0 %v858, 64
    %v1869 = vpop.permute.xlu0 %1868
    %1870 = vrot.lane.b32.xlu0 %v859, 64
    %v1871 = vpop.permute.xlu0 %1870
    %1888 = vmatpush.msra.mxu0 %v1871
    %1889 = vmatpush.msra.mxu0 %v1869
    %1890 = vmatpush.msra.mxu0 %v1867
    %1891 = vmatpush.msra.mxu0 %v1865
    %1892 = vmatpush.msra.mxu0 %v1863
    %1893 = vmatpush.msra.mxu0 %v1861
    %1894 = vmatpush.msra.mxu0 %v1859
    %1895 = vmatpush.msra.mxu0 %v1857
    %1896 = vmatpush.msra.mxu0 %v1855
    %1897 = vmatpush.msra.mxu0 %v1853
    %1898 = vmatpush.msra.mxu0 %v1851
    %1899 = vmatpush.msra.mxu0 %v1849
    %1900 = vmatpush.msra.mxu0 %v1847
    %1901 = vmatpush.msra.mxu0 %v1845
    %1902 = vmatpush.msra.mxu0 %v1843
    %1903 = vmatpush.msra.mxu0 %v1841
    %1904 = vmatmul.f32.gmra.mxu0 %v1838
    %v1905 = vpop.f32.mrf.mxu0
    %v1906 = vadd.f32 0.0, %v1905
    %1907 = vdwg.mxu0
    %1908 = vrot.lane.b32.xlu0 %v860, 64
    %v1909 = vpop.permute.xlu0 %1908
    %1910 = vrot.lane.b32.xlu0 %v861, 64
    %v1911 = vpop.permute.xlu0 %1910
    %1912 = vrot.lane.b32.xlu0 %v862, 64
    %v1913 = vpop.permute.xlu0 %1912
    %1914 = vrot.lane.b32.xlu0 %v863, 64
    %v1915 = vpop.permute.xlu0 %1914
    %1916 = vrot.lane.b32.xlu0 %v864, 64
    %v1917 = vpop.permute.xlu0 %1916
    %1918 = vrot.lane.b32.xlu0 %v865, 64
    %v1919 = vpop.permute.xlu0 %1918
    %1920 = vrot.lane.b32.xlu0 %v866, 64
    %v1921 = vpop.permute.xlu0 %1920
    %1922 = vrot.lane.b32.xlu0 %v867, 64
    %v1923 = vpop.permute.xlu0 %1922
    %1924 = vrot.lane.b32.xlu0 %v868, 64
    %v1925 = vpop.permute.xlu0 %1924
    %1926 = vrot.lane.b32.xlu0 %v869, 64
    %v1927 = vpop.permute.xlu0 %1926
    %1928 = vrot.lane.b32.xlu0 %v870, 64
    %v1929 = vpop.permute.xlu0 %1928
    %1930 = vrot.lane.b32.xlu0 %v871, 64
    %v1931 = vpop.permute.xlu0 %1930
    %1932 = vrot.lane.b32.xlu0 %v872, 64
    %v1933 = vpop.permute.xlu0 %1932
    %1934 = vrot.lane.b32.xlu0 %v873, 64
    %v1935 = vpop.permute.xlu0 %1934
    %1936 = vrot.lane.b32.xlu0 %v874, 64
    %v1937 = vpop.permute.xlu0 %1936
    %1938 = vrot.lane.b32.xlu0 %v875, 64
    %v1939 = vpop.permute.xlu0 %1938
    %1956 = vmatpush.msra.mxu0 %v1939
    %1957 = vmatpush.msra.mxu0 %v1937
    %1958 = vmatpush.msra.mxu0 %v1935
    %1959 = vmatpush.msra.mxu0 %v1933
    %1960 = vmatpush.msra.mxu0 %v1931
    %1961 = vmatpush.msra.mxu0 %v1929
    %1962 = vmatpush.msra.mxu0 %v1927
    %1963 = vmatpush.msra.mxu0 %v1925
    %1964 = vmatpush.msra.mxu0 %v1923
    %1965 = vmatpush.msra.mxu0 %v1921
    %1966 = vmatpush.msra.mxu0 %v1919
    %1967 = vmatpush.msra.mxu0 %v1917
    %1968 = vmatpush.msra.mxu0 %v1915
    %1969 = vmatpush.msra.mxu0 %v1913
    %1970 = vmatpush.msra.mxu0 %v1911
    %1971 = vmatpush.msra.mxu0 %v1909
    %1972 = vmatmul.f32.gmra.mxu0 %v1839
    %v1973 = vpop.f32.mrf.mxu0
    %v1974 = vadd.f32 0.0, %v1973
    %1975 = vdwg.mxu0
    %1976 = vrot.lane.b32.xlu0 %v168, 32
    %v1977 = vpop.permute.xlu0 %1976
    %1978 = vrot.lane.b32.xlu0 %v910, 32
    %v1979 = vpop.permute.xlu0 %1978
    %1980 = vrot.lane.b32.xlu0 %v913, 32
    %v1981 = vpop.permute.xlu0 %1980
    %1982 = vrot.lane.b32.xlu0 %v916, 32
    %v1983 = vpop.permute.xlu0 %1982
    %1984 = vrot.lane.b32.xlu0 %v919, 32
    %v1985 = vpop.permute.xlu0 %1984
    %1986 = vrot.lane.b32.xlu0 %v922, 32
    %v1987 = vpop.permute.xlu0 %1986
    %1988 = vrot.lane.b32.xlu0 %v925, 32
    %v1989 = vpop.permute.xlu0 %1988
    %1990 = vrot.lane.b32.xlu0 %v928, 32
    %v1991 = vpop.permute.xlu0 %1990
    %1992 = vrot.lane.b32.xlu0 %v931, 32
    %v1993 = vpop.permute.xlu0 %1992
    %1994 = vrot.lane.b32.xlu0 %v934, 32
    %v1995 = vpop.permute.xlu0 %1994
    %1996 = vrot.lane.b32.xlu0 %v937, 32
    %v1997 = vpop.permute.xlu0 %1996
    %1998 = vrot.lane.b32.xlu0 %v940, 32
    %v1999 = vpop.permute.xlu0 %1998
    %2000 = vrot.lane.b32.xlu0 %v943, 32
    %v2001 = vpop.permute.xlu0 %2000
    %2002 = vrot.lane.b32.xlu0 %v946, 32
    %v2003 = vpop.permute.xlu0 %2002
    %2004 = vrot.lane.b32.xlu0 %v949, 32
    %v2005 = vpop.permute.xlu0 %2004
    %2006 = vrot.lane.b32.xlu0 %v952, 32
    %v2007 = vpop.permute.xlu0 %2006
    %2008 = vrot.lane.b32.xlu0 %v955, 32
    %v2009 = vpop.permute.xlu0 %2008
    %v2010 = vsel %vm1005, %v1977, 0
    %v2012 = vsel %vm1005, %v1979, 0
    %v2014 = vsel %vm1005, %v1981, 0
    %v2016 = vsel %vm1005, %v1983, 0
    %v2018 = vsel %vm1005, %v1985, 0
    %v2020 = vsel %vm1005, %v1987, 0
    %v2022 = vsel %vm1005, %v1989, 0
    %v2024 = vsel %vm1005, %v1991, 0
    %v2026 = vsel %vm1005, %v1993, 0
    %v2028 = vsel %vm1005, %v1995, 0
    %v2030 = vsel %vm1005, %v1997, 0
    %v2032 = vsel %vm1005, %v1999, 0
    %v2034 = vsel %vm1005, %v2001, 0
    %v2036 = vsel %vm1005, %v2003, 0
    %v2038 = vsel %vm1005, %v2005, 0
    %v2040 = vsel %vm1005, %v2007, 0
    %v2042 = vsel %vm1005, %v2009, 0
    %2044 = vmatpush.xpose.msra.mxu0 %v2042
    %2045 = vmatpush.xpose.msra.mxu0 %v2040
    %2046 = vmatpush.xpose.msra.mxu0 %v2038
    %2047 = vmatpush.xpose.msra.mxu0 %v2036
    %2048 = vmatpush.xpose.msra.mxu0 %v2034
    %2049 = vmatpush.xpose.msra.mxu0 %v2032
    %2050 = vmatpush.xpose.msra.mxu0 %v2030
    %2051 = vmatpush.xpose.msra.mxu0 %v2028
    %2052 = vmatpush.xpose.msra.mxu0 %v2026
    %2053 = vmatpush.xpose.msra.mxu0 %v2024
    %2054 = vmatpush.xpose.msra.mxu0 %v2022
    %2055 = vmatpush.xpose.msra.mxu0 %v2020
    %2056 = vmatpush.xpose.msra.mxu0 %v2018
    %2057 = vmatpush.xpose.msra.mxu0 %v2016
    %2058 = vmatpush.xpose.msra.mxu0 %v2014
    %2059 = vmatpush.xpose.msra.mxu0 %v2012
    %2060 = vmatmul.f32.gmra.mxu0 %v2010
    %v2061 = vpop.f32.mrf.mxu0
    %v2062 = vadd.f32 0.0, %v2061
    %2063 = vdwg.mxu0
    %2064 = vrot.lane.b32.xlu0 %v169, 32
    %v2065 = vpop.permute.xlu0 %2064
    %2066 = vrot.lane.b32.xlu0 %v958, 32
    %v2067 = vpop.permute.xlu0 %2066
    %2068 = vrot.lane.b32.xlu0 %v961, 32
    %v2069 = vpop.permute.xlu0 %2068
    %2070 = vrot.lane.b32.xlu0 %v964, 32
    %v2071 = vpop.permute.xlu0 %2070
    %2072 = vrot.lane.b32.xlu0 %v967, 32
    %v2073 = vpop.permute.xlu0 %2072
    %2074 = vrot.lane.b32.xlu0 %v970, 32
    %v2075 = vpop.permute.xlu0 %2074
    %2076 = vrot.lane.b32.xlu0 %v973, 32
    %v2077 = vpop.permute.xlu0 %2076
    %2078 = vrot.lane.b32.xlu0 %v976, 32
    %v2079 = vpop.permute.xlu0 %2078
    %2080 = vrot.lane.b32.xlu0 %v979, 32
    %v2081 = vpop.permute.xlu0 %2080
    %2082 = vrot.lane.b32.xlu0 %v982, 32
    %v2083 = vpop.permute.xlu0 %2082
    %2084 = vrot.lane.b32.xlu0 %v985, 32
    %v2085 = vpop.permute.xlu0 %2084
    %2086 = vrot.lane.b32.xlu0 %v988, 32
    %v2087 = vpop.permute.xlu0 %2086
    %2088 = vrot.lane.b32.xlu0 %v991, 32
    %v2089 = vpop.permute.xlu0 %2088
    %2090 = vrot.lane.b32.xlu0 %v994, 32
    %v2091 = vpop.permute.xlu0 %2090
    %2092 = vrot.lane.b32.xlu0 %v997, 32
    %v2093 = vpop.permute.xlu0 %2092
    %2094 = vrot.lane.b32.xlu0 %v1000, 32
    %v2095 = vpop.permute.xlu0 %2094
    %2096 = vrot.lane.b32.xlu0 %v1003, 32
    %v2097 = vpop.permute.xlu0 %2096
    %v2098 = vsel %vm1005, %v2065, 0
    %v2100 = vsel %vm1005, %v2067, 0
    %v2102 = vsel %vm1005, %v2069, 0
    %v2104 = vsel %vm1005, %v2071, 0
    %v2106 = vsel %vm1005, %v2073, 0
    %v2108 = vsel %vm1005, %v2075, 0
    %v2110 = vsel %vm1005, %v2077, 0
    %v2112 = vsel %vm1005, %v2079, 0
    %v2114 = vsel %vm1005, %v2081, 0
    %v2116 = vsel %vm1005, %v2083, 0
    %v2118 = vsel %vm1005, %v2085, 0
    %v2120 = vsel %vm1005, %v2087, 0
    %v2122 = vsel %vm1005, %v2089, 0
    %v2124 = vsel %vm1005, %v2091, 0
    %v2126 = vsel %vm1005, %v2093, 0
    %v2128 = vsel %vm1005, %v2095, 0
    %v2130 = vsel %vm1005, %v2097, 0
    %2132 = vmatpush.xpose.msra.mxu0 %v2130
    %2133 = vmatpush.xpose.msra.mxu0 %v2128
    %2134 = vmatpush.xpose.msra.mxu0 %v2126
    %2135 = vmatpush.xpose.msra.mxu0 %v2124
    %2136 = vmatpush.xpose.msra.mxu0 %v2122
    %2137 = vmatpush.xpose.msra.mxu0 %v2120
    %2138 = vmatpush.xpose.msra.mxu0 %v2118
    %2139 = vmatpush.xpose.msra.mxu0 %v2116
    %2140 = vmatpush.xpose.msra.mxu0 %v2114
    %2141 = vmatpush.xpose.msra.mxu0 %v2112
    %2142 = vmatpush.xpose.msra.mxu0 %v2110
    %2143 = vmatpush.xpose.msra.mxu0 %v2108
    %2144 = vmatpush.xpose.msra.mxu0 %v2106
    %2145 = vmatpush.xpose.msra.mxu0 %v2104
    %2146 = vmatpush.xpose.msra.mxu0 %v2102
    %2147 = vmatpush.xpose.msra.mxu0 %v2100
    %2148 = vmatmul.f32.gmra.mxu0 %v2098
    %v2149 = vpop.f32.mrf.mxu0
    %v2150 = vadd.f32 0.0, %v2149
    %2151 = vdwg.mxu0
    %2152 = vmax.xlane.f32.xlu0 %v2062
    %v2153 = vpop.xlane.xlu0 %2152
    %2154 = vmax.xlane.f32.xlu0 %v2150
    %v2155 = vpop.xlane.xlu0 %2154
    %v2156 = vsub.f32 %v2062, %v2153
    %v2157 = vsub.f32 %v2150, %v2155
    %v2158 = vmul.f32 %v2156, 1.442695
    %v2159 = vpow.pop %v2158
    %v2160 = vmul.f32 %v2157, 1.442695
    %v2161 = vpow.pop %v2160
    %2162 = vadd.xlane.f32.xlu0 %v2159
    %v2163 = vpop.xlane.xlu0 %2162
    %2164 = vadd.xlane.f32.xlu0 %v2161
    %v2165 = vpop.xlane.xlu0 %2164
    %v2166 = vrcp.pop %v2163
    %v2167 = vmul.f32 %v2163, %v2166
    %v2168 = vsub.f32 1.0, %v2167
    %v2169 = vmul.f32 %v2166, %v2168
    %v2170 = vadd.f32 %v2166, %v2169
    %vm2171 = vweird.f32 %v2163
    %vm2172 = vweird.f32 %v2166
    %vm2173 = vmor %vm2171, %vm2172
    %v2174 = vsel %vm2173, %v2166, %v2170
    %v2175 = vand.u32 2147483647, %v2163
    %vm2176 = vcmp.eq.f32.partialorder %v2175, 8.507059e+37
    %v2177 = vand.u32 %v2163, 2147483648
    %v2178 = vor.u32 1.1754944e-38, %v2177
    %v2179 = vsel %vm2176, %v2178, %v2174
    %v2180 = vrcp.pop %v2165
    %v2181 = vmul.f32 %v2165, %v2180
    %v2182 = vsub.f32 1.0, %v2181
    %v2183 = vmul.f32 %v2180, %v2182
    %v2184 = vadd.f32 %v2180, %v2183
    %vm2185 = vweird.f32 %v2165
    %vm2186 = vweird.f32 %v2180
    %vm2187 = vmor %vm2185, %vm2186
    %v2188 = vsel %vm2187, %v2180, %v2184
    %v2189 = vand.u32 2147483647, %v2165
    %vm2190 = vcmp.eq.f32.partialorder %v2189, 8.507059e+37
    %v2191 = vand.u32 %v2165, 2147483648
    %v2192 = vor.u32 1.1754944e-38, %v2191
    %v2193 = vsel %vm2190, %v2192, %v2188
    %v2194 = vmul.f32 %v2159, %v2179
    %v2195 = vmul.f32 %v2161, %v2193
    %2196 = vrot.lane.b32.xlu0 %v844, 32
    %v2197 = vpop.permute.xlu0 %2196
    %2198 = vrot.lane.b32.xlu0 %v845, 32
    %v2199 = vpop.permute.xlu0 %2198
    %2200 = vrot.lane.b32.xlu0 %v846, 32
    %v2201 = vpop.permute.xlu0 %2200
    %2202 = vrot.lane.b32.xlu0 %v847, 32
    %v2203 = vpop.permute.xlu0 %2202
    %2204 = vrot.lane.b32.xlu0 %v848, 32
    %v2205 = vpop.permute.xlu0 %2204
    %2206 = vrot.lane.b32.xlu0 %v849, 32
    %v2207 = vpop.permute.xlu0 %2206
    %2208 = vrot.lane.b32.xlu0 %v850, 32
    %v2209 = vpop.permute.xlu0 %2208
    %2210 = vrot.lane.b32.xlu0 %v851, 32
    %v2211 = vpop.permute.xlu0 %2210
    %2212 = vrot.lane.b32.xlu0 %v852, 32
    %v2213 = vpop.permute.xlu0 %2212
    %2214 = vrot.lane.b32.xlu0 %v853, 32
    %v2215 = vpop.permute.xlu0 %2214
    %2216 = vrot.lane.b32.xlu0 %v854, 32
    %v2217 = vpop.permute.xlu0 %2216
    %2218 = vrot.lane.b32.xlu0 %v855, 32
    %v2219 = vpop.permute.xlu0 %2218
    %2220 = vrot.lane.b32.xlu0 %v856, 32
    %v2221 = vpop.permute.xlu0 %2220
    %2222 = vrot.lane.b32.xlu0 %v857, 32
    %v2223 = vpop.permute.xlu0 %2222
    %2224 = vrot.lane.b32.xlu0 %v858, 32
    %v2225 = vpop.permute.xlu0 %2224
    %2226 = vrot.lane.b32.xlu0 %v859, 32
    %v2227 = vpop.permute.xlu0 %2226
    %2244 = vmatpush.msra.mxu0 %v2227
    %2245 = vmatpush.msra.mxu0 %v2225
    %2246 = vmatpush.msra.mxu0 %v2223
    %2247 = vmatpush.msra.mxu0 %v2221
    %2248 = vmatpush.msra.mxu0 %v2219
    %2249 = vmatpush.msra.mxu0 %v2217
    %2250 = vmatpush.msra.mxu0 %v2215
    %2251 = vmatpush.msra.mxu0 %v2213
    %2252 = vmatpush.msra.mxu0 %v2211
    %2253 = vmatpush.msra.mxu0 %v2209
    %2254 = vmatpush.msra.mxu0 %v2207
    %2255 = vmatpush.msra.mxu0 %v2205
    %2256 = vmatpush.msra.mxu0 %v2203
    %2257 = vmatpush.msra.mxu0 %v2201
    %2258 = vmatpush.msra.mxu0 %v2199
    %2259 = vmatpush.msra.mxu0 %v2197
    %2260 = vmatmul.f32.gmra.mxu0 %v2194
    %v2261 = vpop.f32.mrf.mxu0
    %v2262 = vadd.f32 0.0, %v2261
    %2263 = vdwg.mxu0
    %2264 = vrot.lane.b32.xlu0 %v860, 32
    %v2265 = vpop.permute.xlu0 %2264
    %2266 = vrot.lane.b32.xlu0 %v861, 32
    %v2267 = vpop.permute.xlu0 %2266
    %2268 = vrot.lane.b32.xlu0 %v862, 32
    %v2269 = vpop.permute.xlu0 %2268
    %2270 = vrot.lane.b32.xlu0 %v863, 32
    %v2271 = vpop.permute.xlu0 %2270
    %2272 = vrot.lane.b32.xlu0 %v864, 32
    %v2273 = vpop.permute.xlu0 %2272
    %2274 = vrot.lane.b32.xlu0 %v865, 32
    %v2275 = vpop.permute.xlu0 %2274
    %2276 = vrot.lane.b32.xlu0 %v866, 32
    %v2277 = vpop.permute.xlu0 %2276
    %2278 = vrot.lane.b32.xlu0 %v867, 32
    %v2279 = vpop.permute.xlu0 %2278
    %2280 = vrot.lane.b32.xlu0 %v868, 32
    %v2281 = vpop.permute.xlu0 %2280
    %2282 = vrot.lane.b32.xlu0 %v869, 32
    %v2283 = vpop.permute.xlu0 %2282
    %2284 = vrot.lane.b32.xlu0 %v870, 32
    %v2285 = vpop.permute.xlu0 %2284
    %2286 = vrot.lane.b32.xlu0 %v871, 32
    %v2287 = vpop.permute.xlu0 %2286
    %2288 = vrot.lane.b32.xlu0 %v872, 32
    %v2289 = vpop.permute.xlu0 %2288
    %2290 = vrot.lane.b32.xlu0 %v873, 32
    %v2291 = vpop.permute.xlu0 %2290
    %2292 = vrot.lane.b32.xlu0 %v874, 32
    %v2293 = vpop.permute.xlu0 %2292
    %2294 = vrot.lane.b32.xlu0 %v875, 32
    %v2295 = vpop.permute.xlu0 %2294
    %2312 = vmatpush.msra.mxu0 %v2295
    %2313 = vmatpush.msra.mxu0 %v2293
    %2314 = vmatpush.msra.mxu0 %v2291
    %2315 = vmatpush.msra.mxu0 %v2289
    %2316 = vmatpush.msra.mxu0 %v2287
    %2317 = vmatpush.msra.mxu0 %v2285
    %2318 = vmatpush.msra.mxu0 %v2283
    %2319 = vmatpush.msra.mxu0 %v2281
    %2320 = vmatpush.msra.mxu0 %v2279
    %2321 = vmatpush.msra.mxu0 %v2277
    %2322 = vmatpush.msra.mxu0 %v2275
    %2323 = vmatpush.msra.mxu0 %v2273
    %2324 = vmatpush.msra.mxu0 %v2271
    %2325 = vmatpush.msra.mxu0 %v2269
    %2326 = vmatpush.msra.mxu0 %v2267
    %2327 = vmatpush.msra.mxu0 %v2265
    %2328 = vmatmul.f32.gmra.mxu0 %v2195
    %v2329 = vpop.f32.mrf.mxu0
    %v2330 = vadd.f32 0.0, %v2329
    %2331 = vdwg.mxu0
    %2332 = vst [vmem:[#allocation11] sm:$0xff] %v1190
    %2333 = vst [vmem:[#allocation11 + $0x8] sm:$0xff] %v1450
    %2334 = vst [vmem:[#allocation11 + $0x10] sm:$0xff] %v1838
    %2335 = vst [vmem:[#allocation11 + $0x18] sm:$0xff] %v2194
    %2336 = vst [vmem:[#allocation11 + $0x20] sm:$0xff] %v1191
    %2337 = vst [vmem:[#allocation11 + $0x28] sm:$0xff] %v1451
    %2338 = vst [vmem:[#allocation11 + $0x30] sm:$0xff] %v1839
    %2339 = vst [vmem:[#allocation11 + $0x38] sm:$0xff] %v2195
    %2342 = vrot.lane.b32.xlu0 %v1534, 32
    %v2343 = vpop.permute.xlu0 %2342
    %2344 = vrot.lane.b32.xlu0 %v1618, 32
    %v2345 = vpop.permute.xlu0 %2344
    %2350 = vrot.lane.b32.xlu0 %v1906, 64
    %v2351 = vpop.permute.xlu0 %2350
    %2352 = vrot.lane.b32.xlu0 %v1974, 64
    %v2353 = vpop.permute.xlu0 %2352
    %2358 = vrot.lane.b32.xlu0 %v2262, 96
    %v2359 = vpop.permute.xlu0 %2358
    %2360 = vrot.lane.b32.xlu0 %v2330, 96
    %v2361 = vpop.permute.xlu0 %2360
    %v2364 = vsel %vm1005, %v1210, %v2343
    %v2365 = vsel %vm1005, %v1230, %v2345
    %vm2366 = vcmask 523264
    %v2367 = vsel %vm2366, %v2364, %v2351
    %v2368 = vsel %vm2366, %v2365, %v2353
    %vm2369 = vcmask 785408
    %v2370 = vsel %vm2369, %v2367, %v2359
    %v2371 = vsel %vm2369, %v2368, %v2361
    %v2372 = vadd.f32 %v82, %v2370
    %v2373 = vadd.f32 %v83, %v2371
    %2374 = vst [vmem:[#allocation10] sm:$0xff] %v2372
    %2375 = vst [vmem:[#allocation10 + $0x8] sm:$0xff] %v2373
    // Predicated region
    $region34: #{tpu_custom_call.1} parent=1 // pred_check
      _
    $region35: #{tpu_custom_call.1} parent=1 // pred_check_branch
      %2377 = sbr.rel (0) target = $region37
    $region36: #{tpu_custom_call.1} parent=1 // pred_region
      %2379 = vsyncadd [#allocation4], 0
      %s2380 = sshll.u32 [#allocation10], 4
      %s2381 = int_to_ptr.vmem [resolvable:$true] %s2380
      %s2382 = sshll.u32 %s4, 4
      %s2383 = int_to_ptr.hbm [resolvable:$true] %s2382
      %2388 = dma.vmem_to_hbm [thread:$0]  %s2381, 256, %s2383, [#allocation4], 128, 128, 8
    $region37: #{tpu_custom_call.1} parent=1 // pred_fallthru
      _
    // Predicated region
    $region38: #{tpu_custom_call.1} parent=1 // pred_check
      _
    $region39: #{tpu_custom_call.1} parent=1 // pred_check_branch
      %2390 = sbr.rel (0) target = $region41
    $region40: #{tpu_custom_call.1} parent=1 // pred_region
      %2392 = vsyncadd [#allocation12], 0
      %s2393 = sshll.u32 [#allocation11], 4
      %s2394 = int_to_ptr.vmem [resolvable:$true] %s2393
      %s2395 = sshll.u32 %s5, 4
      %s2396 = int_to_ptr.hbm [resolvable:$true] %s2395
      %2401 = dma.vmem_to_hbm [thread:$0]  %s2394, 1024, %s2396, [#allocation12], 128, 128, 8
    $region41: #{tpu_custom_call.1} parent=1 // pred_fallthru
      _
    // Predicated region
    $region42: #{tpu_custom_call.1} parent=1 // pred_check
      _
    $region43: #{tpu_custom_call.1} parent=1 // pred_check_branch
      %2403 = sbr.rel (0) target = $region45
    $region44: #{tpu_custom_call.1} parent=1 // pred_region
      %2405 = dma.done [#allocation4], 256
    $region45: #{tpu_custom_call.1} parent=1 // pred_fallthru
      _
    // Predicated region
    $region46: #{tpu_custom_call.1} parent=1 // pred_check
      _
    $region47: #{tpu_custom_call.1} parent=1 // pred_check_branch
      %2407 = sbr.rel (0) target = $region49
    $region48: #{tpu_custom_call.1} parent=1 // pred_region
      %2409 = dma.done [#allocation12], 1024
    $region49: #{tpu_custom_call.1} parent=1 // pred_fallthru
      _
    %2410 = vsyncpa [#allocation3], 1
    %2411 = vsyncpa [#allocation6], 1
    %2412 = vsyncpa [#allocation9], 1
    %2413 = vsyncpa [#allocation4], 1
    %2414 = vsyncpa [#allocation12], 1

</llo_original>
